<compile_context>
chip_gen: v7x
topology: tpu7x:2x2x1
jax: 0.10.0
libtpu: 0.0.40
codegen_flags: <defaults>
</compile_context>

<pallas_src>
import jax
import jax.numpy as jnp
from jax import lax
from jax.experimental import pallas as pl
from jax.experimental.pallas import tpu as pltpu


def _round_up(x, m):
    return (x + m - 1) // m * m


# ---------------------------------------------------------------------------
# Kernel
# ---------------------------------------------------------------------------
def _window_classifier_kernel(ids_ref, ew1_ref, b1_ref, w2_ref, b2_ref,
                              w3_ref, b3_ref, out_ref):
    tb, w_sz = ids_ref.shape
    kdim = ew1_ref.shape[0]          # W * Vp  (flattened gather axis)
    vpad = kdim // w_sz

    ids = ids_ref[...]                                           # (TB, W) int32

    # Flattened one-hot over the concatenated (W * Vp) gather axis: row b has a 1
    # at column w*Vp + ids[b, w] for every window position w.  Built directly in
    # the flat layout so no in-kernel reshape is needed.
    col = lax.broadcasted_iota(jnp.int32, (tb, kdim), 1)
    hit = col == ids[:, 0:1]                                     # w = 0 (offset 0)
    for w in range(1, w_sz):                                     # W small: static unroll
        hit = jnp.logical_or(hit, col == (ids[:, w:w + 1] + w * vpad))
    onehot = hit.astype(ew1_ref.dtype)                           # (TB, W*Vp) bf16

    # Fused embedding gather + hidden_layer1: one long-K MXU pass.
    acc = jnp.dot(onehot, ew1_ref[...], preferred_element_type=jnp.float32)
    h0 = jnp.maximum(acc + b1_ref[...], 0.0)                     # (TB, Hp) f32

    # hidden_layer2 + ReLU
    h1 = jnp.dot(h0.astype(w2_ref.dtype), w2_ref[...],
                 preferred_element_type=jnp.float32)
    h1 = jnp.maximum(h1 + b2_ref[...], 0.0)                      # (TB, Hp) f32

    # output_layer (padded logit columns get bias -inf, kept in f32)
    z = jnp.dot(h1.astype(w3_ref.dtype), w3_ref[...],
                preferred_element_type=jnp.float32) + b3_ref[...]  # (TB, Op) f32

    # LogSoftmax along dim=1 (padded columns are -inf -> exp() == 0)
    m = jnp.max(z, axis=-1, keepdims=True)
    lse = m + jnp.log(jnp.sum(jnp.exp(z - m), axis=-1, keepdims=True))
    out_ref[...] = (z - lse).astype(out_ref.dtype)


# ---------------------------------------------------------------------------
# One-time parameter preparation (off the hot path)
# ---------------------------------------------------------------------------
def prepare_params(params, *, param_dtype=jnp.bfloat16):
    """Fold embed into hidden_layer1, pad every dim to the 128-lane granule and
    cast matmul operands to bf16.  Call ONCE at load time; pass the result to
    window_classifier_forward."""
    embed = params["embed"].astype(jnp.float32)
    w1 = params["w1"].astype(jnp.float32)
    b1 = params["b1"].astype(jnp.float32)
    w2 = params["w2"].astype(jnp.float32)
    b2 = params["b2"].astype(jnp.float32)
    w3 = params["w3"].astype(jnp.float32)
    b3 = params["b3"].astype(jnp.float32)

    V, E = embed.shape
    d_in, H = w1.shape
    W = d_in // E
    assert W * E == d_in
    O = w3.shape[1]

    Vp = _round_up(V, 128)
    Hp = _round_up(H, 128)
    Op = _round_up(O, 128)

    # ew1[w*Vp + v, h] = embed[v] @ W1[w*E:(w+1)*E, h]   (padded rows/cols are 0)
    embed_p = jnp.zeros((Vp, E), jnp.float32).at[:V].set(embed)
    w1_r = w1.reshape(W, E, H)
    ew1 = jnp.einsum("ve,weh->wvh", embed_p, w1_r).reshape(W * Vp, H)
    ew1_p = jnp.zeros((W * Vp, Hp), jnp.float32).at[:, :H].set(ew1)

    w2_p = jnp.zeros((Hp, Hp), jnp.float32).at[:H, :H].set(w2)
    w3_p = jnp.zeros((Hp, Op), jnp.float32).at[:H, :O].set(w3)
    b1_p = jnp.zeros((1, Hp), jnp.float32).at[0, :H].set(b1)
    b2_p = jnp.zeros((1, Hp), jnp.float32).at[0, :H].set(b2)
    # Padded logits must be -inf (NOT 0) so the softmax denominator is unchanged.
    # b3 stays f32 — do not cast this bias path down.
    b3_p = jnp.full((1, Op), -jnp.inf, jnp.float32).at[0, :O].set(b3)

    return {
        "ew1": ew1_p.astype(param_dtype),   # (W*Vp, Hp) bf16
        "w2": w2_p.astype(param_dtype),     # (Hp, Hp)   bf16
        "w3": w3_p.astype(param_dtype),     # (Hp, Op)   bf16
        "b1": b1_p, "b2": b2_p, "b3": b3_p, # f32 biases
        "dims": {"V": V, "E": E, "W": W, "H": H, "O": O,
                 "Vp": Vp, "Hp": Hp, "Op": Op},
    }


# ---------------------------------------------------------------------------
# pallas_call builder + forward
# ---------------------------------------------------------------------------
def _build_pallas_call(*, TB, W, Kdim, Hp, Op, Bp, out_dtype,
                       vmem_limit_bytes, single_buffer_weights):
    def resident(shape):
        nd = len(shape)
        kw = {}
        if single_buffer_weights:
            # Constant index_map -> no pipelining needed; halve VMEM footprint.
            kw["pipeline_mode"] = pl.Buffered(1)
        return pl.BlockSpec(shape, lambda i, _nd=nd: (0,) * _nd, **kw)

    return pl.pallas_call(
        _window_classifier_kernel,
        out_shape=jax.ShapeDtypeStruct((Bp, Op), out_dtype),
        grid=(Bp // TB,),
        in_specs=[
            pl.BlockSpec((TB, W), lambda i: (i, 0)),   # streamed ids (double-buffered)
            resident((Kdim, Hp)),                      # folded embed @ W1 (bf16)
            resident((1, Hp)),                         # b1 (f32)
            resident((Hp, Hp)),                        # w2 (bf16)
            resident((1, Hp)),                         # b2 (f32)
            resident((Hp, Op)),                        # w3 (bf16)
            resident((1, Op)),                         # b3 (f32, -inf padded)
        ],
        out_specs=pl.BlockSpec((TB, Op), lambda i: (i, 0)),
        compiler_params=pltpu.CompilerParams(
            dimension_semantics=("parallel",),
            vmem_limit_bytes=vmem_limit_bytes),
    )


def window_classifier_forward(token_ids, prepared, *, block_b=256,
                              out_dtype=jnp.float32):
    """token_ids: (B, W) int32; prepared: output of prepare_params().
    Returns log-probs (B, O).  Pass out_dtype=jnp.bfloat16 to halve the logit
    writeback if downstream accepts bf16 log-probs."""
    d = prepared["dims"]
    W, O, Op, Hp, Vp = d["W"], d["O"], d["Op"], d["Hp"], d["Vp"]
    Kdim = W * Vp
    B = token_ids.shape[0]
    assert token_ids.shape[1] == W

    # --- batch tiling -------------------------------------------------------
    # Multiple-of-8 block, minimal padding, and >= 2 grid steps once B >= 16 so
    # the "parallel" axis actually shards across both TensorCores on v7x.
    block_b = max(8, _round_up(int(block_b), 8))
    min_steps = 2 if B >= 16 else 1
    n_steps = max(min_steps, pl.cdiv(B, block_b))
    TB = _round_up(pl.cdiv(B, n_steps), 8)
    Bp = _round_up(B, TB)

    ids_p = jnp.zeros((Bp, W), jnp.int32).at[:B].set(token_ids.astype(jnp.int32))

    # --- explicit VMEM budget (v5e/v6e scoped defaults are 16/32 MiB) --------
    resident_bytes = sum(int(prepared[k].nbytes)
                         for k in ("ew1", "b1", "w2", "b2", "w3", "b3"))
    stream_bytes = 2 * (TB * W * 4 + TB * Op * jnp.dtype(out_dtype).itemsize)
    vmem_limit_bytes = int(min(64 << 20,
                               max(16 << 20,
                                   2 * resident_bytes + 2 * stream_bytes
                                   + (4 << 20))))

    args = (ids_p, prepared["ew1"], prepared["b1"], prepared["w2"],
            prepared["b2"], prepared["w3"], prepared["b3"])
    try:
        out = _build_pallas_call(
            TB=TB, W=W, Kdim=Kdim, Hp=Hp, Op=Op, Bp=Bp, out_dtype=out_dtype,
            vmem_limit_bytes=vmem_limit_bytes,
            single_buffer_weights=True)(*args)
    except Exception:
        # jax/libtpu builds that reject pipeline_mode=pl.Buffered(1): fall back
        # to default double-buffered resident weights (identical results).
        out = _build_pallas_call(
            TB=TB, W=W, Kdim=Kdim, Hp=Hp, Op=Op, Bp=Bp, out_dtype=out_dtype,
            vmem_limit_bytes=vmem_limit_bytes,
            single_buffer_weights=False)(*args)

    return out[:B, :O]   # keep this slice: padded rows/cols are dropped here


# ---------------------------------------------------------------------------
# Pure-JAX reference + synthetic params
# ---------------------------------------------------------------------------
def window_classifier_reference(token_ids, params):
    """Pure-JAX f32 reference matching the PyTorch module (inference path)."""
    x = jnp.take(params["embed"], token_ids, axis=0)
    B, W, E = x.shape
    x = x.reshape(B, W * E).astype(jnp.float32)
    h0 = jax.nn.relu(x @ params["w1"] + params["b1"])
    h1 = jax.nn.relu(h0 @ params["w2"] + params["b2"])
    z = h1 @ params["w3"] + params["b3"]
    return jax.nn.log_softmax(z, axis=-1)


def init_params(key, vocab_size, embedding_size, window_size, hidden_size,
                output_size):
    """Deterministic synthetic parameters matching the nn.Module shapes."""
    W = 2 * window_size + 1
    d_in = embedding_size * W
    ks = jax.random.split(key, 7)

    def lin(kw, fan_in, fan_out):
        bound = 1.0 / jnp.sqrt(fan_in)
        # stored as (in, out)  ==  PyTorch weight (out, in) transposed
        return jax.random.uniform(kw, (fan_in, fan_out), jnp.float32,
                                  -bound, bound)

    return {
        "embed": jax.random.normal(ks[0], (vocab_size, embedding_size),
                                   jnp.float32),
        "w1": lin(ks[1], d_in, hidden_size),
        "b1": jax.random.uniform(ks[2], (hidden_size,), jnp.float32,
                                 -1.0 / jnp.sqrt(d_in), 1.0 / jnp.sqrt(d_in)),
        "w2": lin(ks[3], hidden_size, hidden_size),
        "b2": jax.random.uniform(ks[4], (hidden_size,), jnp.float32,
                                 -1.0 / jnp.sqrt(hidden_size),
                                 1.0 / jnp.sqrt(hidden_size)),
        "w3": lin(ks[5], hidden_size, output_size),
        "b3": jax.random.uniform(ks[6], (output_size,), jnp.float32,
                                 -1.0 / jnp.sqrt(hidden_size),
                                 1.0 / jnp.sqrt(hidden_size)),
    }


if __name__ == "__main__":
    vocab_size, embedding_size, window_size = 100, 32, 2
    hidden_size, output_size = 32, 8
    batch = 32
    W = 2 * window_size + 1

    key = jax.random.PRNGKey(0)
    k_params, k_tokens = jax.random.split(key)
    params = init_params(k_params, vocab_size, embedding_size, window_size,
                         hidden_size, output_size)
    token_ids = jax.random.randint(k_tokens, (batch, W), 0, vocab_size,
                                   dtype=jnp.int32)

    prepared = prepare_params(params)          # one-time, off the hot path
    logp = window_classifier_forward(token_ids, prepared)
    jax.block_until_ready(logp)

    assert logp.shape == (batch, output_size)
    assert bool(jnp.all(jnp.isfinite(logp)))
    # Rows must be valid log-probabilities (padded -inf logits contributed 0).
    assert jnp.allclose(jnp.exp(logp).sum(axis=1), 1.0, atol=1e-4)
    # Match the pure-JAX f32 reference within bf16-matmul tolerance.
    ref = window_classifier_reference(token_ids, params)
    err = float(jnp.abs(logp - ref).max())
    assert err < 1e-1, err
    print("KERNEL_OK")
</pallas_src>

<mosaic_0001>
module attributes {stable_mosaic.version = 11 : i64} {
  func.func @_window_classifier_kernel(%arg0: i32, %arg1: memref<16x5xi32, #tpu.memory_space<vmem>>, %arg2: memref<640x128xbf16, #tpu.memory_space<vmem>>, %arg3: memref<1x128xf32, #tpu.memory_space<vmem>>, %arg4: memref<128x128xbf16, #tpu.memory_space<vmem>>, %arg5: memref<1x128xf32, #tpu.memory_space<vmem>>, %arg6: memref<128x128xbf16, #tpu.memory_space<vmem>>, %arg7: memref<1x128xf32, #tpu.memory_space<vmem>>, %arg8: memref<16x128xf32, #tpu.memory_space<vmem>>) attributes {dimension_semantics = [#tpu.dimension_semantics<parallel>], iteration_bounds = array<i64: 2>, scalar_prefetch = 0 : i64, scratch_operands = 0 : i64, tpu.core_type = #tpu.core_type<tc>, window_params = [{transform_indices = @transform_0, window_bounds = array<i64: 16, 5>}, {pipeline_mode = #tpu.pipeline_mode<synchronous>, transform_indices = @transform_1, window_bounds = array<i64: 640, 128>}, {pipeline_mode = #tpu.pipeline_mode<synchronous>, transform_indices = @transform_2, window_bounds = array<i64: 1, 128>}, {pipeline_mode = #tpu.pipeline_mode<synchronous>, transform_indices = @transform_3, window_bounds = array<i64: 128, 128>}, {pipeline_mode = #tpu.pipeline_mode<synchronous>, transform_indices = @transform_4, window_bounds = array<i64: 1, 128>}, {pipeline_mode = #tpu.pipeline_mode<synchronous>, transform_indices = @transform_5, window_bounds = array<i64: 128, 128>}, {pipeline_mode = #tpu.pipeline_mode<synchronous>, transform_indices = @transform_6, window_bounds = array<i64: 1, 128>}, {transform_indices = @transform_7, window_bounds = array<i64: 16, 128>}]} {
    %c0 = arith.constant 0 : index
    %c0_0 = arith.constant 0 : index
    %0 = vector.load %arg1[%c0, %c0_0] : memref<16x5xi32, #tpu.memory_space<vmem>>, vector<16x5xi32>
    %1 = tpu.iota {dimensions = array<i32: 1>} : vector<16x640xi32>
    %2 = vector.extract_strided_slice %0 {offsets = [0, 0], sizes = [16, 1], strides = [1, 1]} : vector<16x5xi32> to vector<16x1xi32>
    %3 = vector.broadcast %2 : vector<16x1xi32> to vector<16x640xi32>
    %4 = arith.cmpi eq, %1, %3 : vector<16x640xi32>
    %5 = vector.extract_strided_slice %0 {offsets = [0, 1], sizes = [16, 1], strides = [1, 1]} : vector<16x5xi32> to vector<16x1xi32>
    %c128_i32 = arith.constant 128 : i32
    %6 = vector.broadcast %c128_i32 : i32 to vector<16x1xi32>
    %7 = arith.addi %5, %6 : vector<16x1xi32>
    %8 = vector.broadcast %7 : vector<16x1xi32> to vector<16x640xi32>
    %9 = arith.cmpi eq, %1, %8 : vector<16x640xi32>
    %10 = arith.ori %4, %9 : vector<16x640xi1>
    %11 = vector.extract_strided_slice %0 {offsets = [0, 2], sizes = [16, 1], strides = [1, 1]} : vector<16x5xi32> to vector<16x1xi32>
    %c256_i32 = arith.constant 256 : i32
    %12 = vector.broadcast %c256_i32 : i32 to vector<16x1xi32>
    %13 = arith.addi %11, %12 : vector<16x1xi32>
    %14 = vector.broadcast %13 : vector<16x1xi32> to vector<16x640xi32>
    %15 = arith.cmpi eq, %1, %14 : vector<16x640xi32>
    %16 = arith.ori %10, %15 : vector<16x640xi1>
    %17 = vector.extract_strided_slice %0 {offsets = [0, 3], sizes = [16, 1], strides = [1, 1]} : vector<16x5xi32> to vector<16x1xi32>
    %c384_i32 = arith.constant 384 : i32
    %18 = vector.broadcast %c384_i32 : i32 to vector<16x1xi32>
    %19 = arith.addi %17, %18 : vector<16x1xi32>
    %20 = vector.broadcast %19 : vector<16x1xi32> to vector<16x640xi32>
    %21 = arith.cmpi eq, %1, %20 : vector<16x640xi32>
    %22 = arith.ori %16, %21 : vector<16x640xi1>
    %23 = vector.extract_strided_slice %0 {offsets = [0, 4], sizes = [16, 1], strides = [1, 1]} : vector<16x5xi32> to vector<16x1xi32>
    %c512_i32 = arith.constant 512 : i32
    %24 = vector.broadcast %c512_i32 : i32 to vector<16x1xi32>
    %25 = arith.addi %23, %24 : vector<16x1xi32>
    %26 = vector.broadcast %25 : vector<16x1xi32> to vector<16x640xi32>
    %27 = arith.cmpi eq, %1, %26 : vector<16x640xi32>
    %28 = arith.ori %22, %27 : vector<16x640xi1>
    %29 = arith.extui %28 : vector<16x640xi1> to vector<16x640xi32>
    %30 = arith.sitofp %29 : vector<16x640xi32> to vector<16x640xf32>
    %31 = arith.truncf %30 : vector<16x640xf32> to vector<16x640xbf16>
    %c0_1 = arith.constant 0 : index
    %c0_2 = arith.constant 0 : index
    %32 = vector.load %arg2[%c0_1, %c0_2] : memref<640x128xbf16, #tpu.memory_space<vmem>>, vector<640x128xbf16>
    %cst = arith.constant dense<0.000000e+00> : vector<16x128xf32>
    %33 = tpu.matmul %31, %32, %cst {dimension_numbers = #tpu.dot_dimension_numbers<[1], [0], [0], [1], [0, 0, 1, 1], [], []>} : vector<16x640xbf16>, vector<640x128xbf16>, vector<16x128xf32> -> vector<16x128xf32>
    %c0_3 = arith.constant 0 : index
    %c0_4 = arith.constant 0 : index
    %34 = vector.load %arg3[%c0_3, %c0_4] : memref<1x128xf32, #tpu.memory_space<vmem>>, vector<1x128xf32>
    %35 = vector.broadcast %34 : vector<1x128xf32> to vector<16x128xf32>
    %36 = arith.addf %33, %35 : vector<16x128xf32>
    %cst_5 = arith.constant 0.000000e+00 : f32
    %37 = vector.broadcast %cst_5 : f32 to vector<16x128xf32>
    %38 = arith.maximumf %36, %37 : vector<16x128xf32>
    %39 = arith.truncf %38 : vector<16x128xf32> to vector<16x128xbf16>
    %c0_6 = arith.constant 0 : index
    %c0_7 = arith.constant 0 : index
    %40 = vector.load %arg4[%c0_6, %c0_7] : memref<128x128xbf16, #tpu.memory_space<vmem>>, vector<128x128xbf16>
    %cst_8 = arith.constant dense<0.000000e+00> : vector<16x128xf32>
    %41 = tpu.matmul %39, %40, %cst_8 {dimension_numbers = #tpu.dot_dimension_numbers<[1], [0], [0], [1], [0, 0, 1, 1], [], []>} : vector<16x128xbf16>, vector<128x128xbf16>, vector<16x128xf32> -> vector<16x128xf32>
    %c0_9 = arith.constant 0 : index
    %c0_10 = arith.constant 0 : index
    %42 = vector.load %arg5[%c0_9, %c0_10] : memref<1x128xf32, #tpu.memory_space<vmem>>, vector<1x128xf32>
    %43 = vector.broadcast %42 : vector<1x128xf32> to vector<16x128xf32>
    %44 = arith.addf %41, %43 : vector<16x128xf32>
    %cst_11 = arith.constant 0.000000e+00 : f32
    %45 = vector.broadcast %cst_11 : f32 to vector<16x128xf32>
    %46 = arith.maximumf %44, %45 : vector<16x128xf32>
    %47 = arith.truncf %46 : vector<16x128xf32> to vector<16x128xbf16>
    %c0_12 = arith.constant 0 : index
    %c0_13 = arith.constant 0 : index
    %48 = vector.load %arg6[%c0_12, %c0_13] : memref<128x128xbf16, #tpu.memory_space<vmem>>, vector<128x128xbf16>
    %cst_14 = arith.constant dense<0.000000e+00> : vector<16x128xf32>
    %49 = tpu.matmul %47, %48, %cst_14 {dimension_numbers = #tpu.dot_dimension_numbers<[1], [0], [0], [1], [0, 0, 1, 1], [], []>} : vector<16x128xbf16>, vector<128x128xbf16>, vector<16x128xf32> -> vector<16x128xf32>
    %c0_15 = arith.constant 0 : index
    %c0_16 = arith.constant 0 : index
    %50 = vector.load %arg7[%c0_15, %c0_16] : memref<1x128xf32, #tpu.memory_space<vmem>>, vector<1x128xf32>
    %51 = vector.broadcast %50 : vector<1x128xf32> to vector<16x128xf32>
    %52 = arith.addf %49, %51 : vector<16x128xf32>
    %cst_17 = arith.constant dense<0xFF800000> : vector<16xf32>
    %53 = vector.multi_reduction <maximumf>, %52, %cst_17 [1] : vector<16x128xf32> to vector<16xf32>
    %54 = vector.shape_cast %53 : vector<16xf32> to vector<16x1xf32>
    %55 = vector.broadcast %54 : vector<16x1xf32> to vector<16x128xf32>
    %56 = arith.subf %52, %55 : vector<16x128xf32>
    %57 = math.exp %56 : vector<16x128xf32>
    %cst_18 = arith.constant dense<0.000000e+00> : vector<16xf32>
    %58 = vector.multi_reduction <add>, %57, %cst_18 [1] : vector<16x128xf32> to vector<16xf32>
    %59 = vector.shape_cast %58 : vector<16xf32> to vector<16x1xf32>
    %60 = math.log %59 : vector<16x1xf32>
    %61 = arith.addf %54, %60 : vector<16x1xf32>
    %62 = vector.broadcast %61 : vector<16x1xf32> to vector<16x128xf32>
    %63 = arith.subf %52, %62 : vector<16x128xf32>
    %c0_19 = arith.constant 0 : index
    %c0_20 = arith.constant 0 : index
    %64 = vector.load %arg8[%c0_19, %c0_20] : memref<16x128xf32, #tpu.memory_space<vmem>>, vector<16x128xf32>
    tpu.vector_store %arg8[%c0_19, %c0_20], %63 {strides = array<i32>} : memref<16x128xf32, #tpu.memory_space<vmem>>, vector<16x128xf32>,
    return
  }
  func.func @transform_0(%arg0: i32) -> (i32, i32) {
    %c0_i32 = arith.constant 0 : i32
    %c0_i32_0 = arith.constant 0 : i32
    return %arg0, %c0_i32 : i32, i32
  }
  func.func @transform_1(%arg0: i32) -> (i32, i32) {
    %c0_i32 = arith.constant 0 : i32
    %c0_i32_0 = arith.constant 0 : i32
    %c0_i32_1 = arith.constant 0 : i32
    return %c0_i32, %c0_i32_0 : i32, i32
  }
  func.func @transform_2(%arg0: i32) -> (i32, i32) {
    %c0_i32 = arith.constant 0 : i32
    %c0_i32_0 = arith.constant 0 : i32
    %c0_i32_1 = arith.constant 0 : i32
    return %c0_i32, %c0_i32_0 : i32, i32
  }
  func.func @transform_3(%arg0: i32) -> (i32, i32) {
    %c0_i32 = arith.constant 0 : i32
    %c0_i32_0 = arith.constant 0 : i32
    %c0_i32_1 = arith.constant 0 : i32
    return %c0_i32, %c0_i32_0 : i32, i32
  }
  func.func @transform_4(%arg0: i32) -> (i32, i32) {
    %c0_i32 = arith.constant 0 : i32
    %c0_i32_0 = arith.constant 0 : i32
    %c0_i32_1 = arith.constant 0 : i32
    return %c0_i32, %c0_i32_0 : i32, i32
  }
  func.func @transform_5(%arg0: i32) -> (i32, i32) {
    %c0_i32 = arith.constant 0 : i32
    %c0_i32_0 = arith.constant 0 : i32
    %c0_i32_1 = arith.constant 0 : i32
    return %c0_i32, %c0_i32_0 : i32, i32
  }
  func.func @transform_6(%arg0: i32) -> (i32, i32) {
    %c0_i32 = arith.constant 0 : i32
    %c0_i32_0 = arith.constant 0 : i32
    %c0_i32_1 = arith.constant 0 : i32
    return %c0_i32, %c0_i32_0 : i32, i32
  }
  func.func @transform_7(%arg0: i32) -> (i32, i32) {
    %c0_i32 = arith.constant 0 : i32
    %c0_i32_0 = arith.constant 0 : i32
    return %arg0, %c0_i32 : i32, i32
  }
}

module attributes {stable_mosaic.version = 11 : i64} {
  func.func @_window_classifier_kernel(%arg0: i32, %arg1: memref<16x5xi32, #tpu.memory_space<vmem>>, %arg2: memref<640x128xbf16, #tpu.memory_space<vmem>>, %arg3: memref<1x128xf32, #tpu.memory_space<vmem>>, %arg4: memref<128x128xbf16, #tpu.memory_space<vmem>>, %arg5: memref<1x128xf32, #tpu.memory_space<vmem>>, %arg6: memref<128x128xbf16, #tpu.memory_space<vmem>>, %arg7: memref<1x128xf32, #tpu.memory_space<vmem>>, %arg8: memref<16x128xf32, #tpu.memory_space<vmem>>) attributes {dimension_semantics = [#tpu.dimension_semantics<parallel>], iteration_bounds = array<i64: 2>, scalar_prefetch = 0 : i64, scratch_operands = 0 : i64, tpu.core_type = #tpu.core_type<tc>, window_params = [{transform_indices = @transform_0, window_bounds = array<i64: 16, 5>}, {pipeline_mode = #tpu.pipeline_mode<synchronous>, transform_indices = @transform_1, window_bounds = array<i64: 640, 128>}, {pipeline_mode = #tpu.pipeline_mode<synchronous>, transform_indices = @transform_2, window_bounds = array<i64: 1, 128>}, {pipeline_mode = #tpu.pipeline_mode<synchronous>, transform_indices = @transform_3, window_bounds = array<i64: 128, 128>}, {pipeline_mode = #tpu.pipeline_mode<synchronous>, transform_indices = @transform_4, window_bounds = array<i64: 1, 128>}, {pipeline_mode = #tpu.pipeline_mode<synchronous>, transform_indices = @transform_5, window_bounds = array<i64: 128, 128>}, {pipeline_mode = #tpu.pipeline_mode<synchronous>, transform_indices = @transform_6, window_bounds = array<i64: 1, 128>}, {transform_indices = @transform_7, window_bounds = array<i64: 16, 128>}]} {
    %c0 = arith.constant 0 : index
    %c0_0 = arith.constant 0 : index
    %0 = vector.load %arg1[%c0, %c0_0] : memref<16x5xi32, #tpu.memory_space<vmem>>, vector<16x5xi32>
    %1 = tpu.iota {dimensions = array<i32: 1>} : vector<16x640xi32>
    %2 = vector.extract_strided_slice %0 {offsets = [0, 0], sizes = [16, 1], strides = [1, 1]} : vector<16x5xi32> to vector<16x1xi32>
    %3 = vector.broadcast %2 : vector<16x1xi32> to vector<16x640xi32>
    %4 = arith.cmpi eq, %1, %3 : vector<16x640xi32>
    %5 = vector.extract_strided_slice %0 {offsets = [0, 1], sizes = [16, 1], strides = [1, 1]} : vector<16x5xi32> to vector<16x1xi32>
    %c128_i32 = arith.constant 128 : i32
    %6 = vector.broadcast %c128_i32 : i32 to vector<16x1xi32>
    %7 = arith.addi %5, %6 : vector<16x1xi32>
    %8 = vector.broadcast %7 : vector<16x1xi32> to vector<16x640xi32>
    %9 = arith.cmpi eq, %1, %8 : vector<16x640xi32>
    %10 = arith.ori %4, %9 : vector<16x640xi1>
    %11 = vector.extract_strided_slice %0 {offsets = [0, 2], sizes = [16, 1], strides = [1, 1]} : vector<16x5xi32> to vector<16x1xi32>
    %c256_i32 = arith.constant 256 : i32
    %12 = vector.broadcast %c256_i32 : i32 to vector<16x1xi32>
    %13 = arith.addi %11, %12 : vector<16x1xi32>
    %14 = vector.broadcast %13 : vector<16x1xi32> to vector<16x640xi32>
    %15 = arith.cmpi eq, %1, %14 : vector<16x640xi32>
    %16 = arith.ori %10, %15 : vector<16x640xi1>
    %17 = vector.extract_strided_slice %0 {offsets = [0, 3], sizes = [16, 1], strides = [1, 1]} : vector<16x5xi32> to vector<16x1xi32>
    %c384_i32 = arith.constant 384 : i32
    %18 = vector.broadcast %c384_i32 : i32 to vector<16x1xi32>
    %19 = arith.addi %17, %18 : vector<16x1xi32>
    %20 = vector.broadcast %19 : vector<16x1xi32> to vector<16x640xi32>
    %21 = arith.cmpi eq, %1, %20 : vector<16x640xi32>
    %22 = arith.ori %16, %21 : vector<16x640xi1>
    %23 = vector.extract_strided_slice %0 {offsets = [0, 4], sizes = [16, 1], strides = [1, 1]} : vector<16x5xi32> to vector<16x1xi32>
    %c512_i32 = arith.constant 512 : i32
    %24 = vector.broadcast %c512_i32 : i32 to vector<16x1xi32>
    %25 = arith.addi %23, %24 : vector<16x1xi32>
    %26 = vector.broadcast %25 : vector<16x1xi32> to vector<16x640xi32>
    %27 = arith.cmpi eq, %1, %26 : vector<16x640xi32>
    %28 = arith.ori %22, %27 : vector<16x640xi1>
    %29 = arith.extui %28 : vector<16x640xi1> to vector<16x640xi32>
    %30 = arith.sitofp %29 : vector<16x640xi32> to vector<16x640xf32>
    %31 = arith.truncf %30 : vector<16x640xf32> to vector<16x640xbf16>
    %c0_1 = arith.constant 0 : index
    %c0_2 = arith.constant 0 : index
    %32 = vector.load %arg2[%c0_1, %c0_2] : memref<640x128xbf16, #tpu.memory_space<vmem>>, vector<640x128xbf16>
    %cst = arith.constant dense<0.000000e+00> : vector<16x128xf32>
    %33 = tpu.matmul %31, %32, %cst {dimension_numbers = #tpu.dot_dimension_numbers<[1], [0], [0], [1], [0, 0, 1, 1], [], []>} : vector<16x640xbf16>, vector<640x128xbf16>, vector<16x128xf32> -> vector<16x128xf32>
    %c0_3 = arith.constant 0 : index
    %c0_4 = arith.constant 0 : index
    %34 = vector.load %arg3[%c0_3, %c0_4] : memref<1x128xf32, #tpu.memory_space<vmem>>, vector<1x128xf32>
    %35 = vector.broadcast %34 : vector<1x128xf32> to vector<16x128xf32>
    %36 = arith.addf %33, %35 : vector<16x128xf32>
    %cst_5 = arith.constant 0.000000e+00 : f32
    %37 = vector.broadcast %cst_5 : f32 to vector<16x128xf32>
    %38 = arith.maximumf %36, %37 : vector<16x128xf32>
    %39 = arith.truncf %38 : vector<16x128xf32> to vector<16x128xbf16>
    %c0_6 = arith.constant 0 : index
    %c0_7 = arith.constant 0 : index
    %40 = vector.load %arg4[%c0_6, %c0_7] : memref<128x128xbf16, #tpu.memory_space<vmem>>, vector<128x128xbf16>
    %cst_8 = arith.constant dense<0.000000e+00> : vector<16x128xf32>
    %41 = tpu.matmul %39, %40, %cst_8 {dimension_numbers = #tpu.dot_dimension_numbers<[1], [0], [0], [1], [0, 0, 1, 1], [], []>} : vector<16x128xbf16>, vector<128x128xbf16>, vector<16x128xf32> -> vector<16x128xf32>
    %c0_9 = arith.constant 0 : index
    %c0_10 = arith.constant 0 : index
    %42 = vector.load %arg5[%c0_9, %c0_10] : memref<1x128xf32, #tpu.memory_space<vmem>>, vector<1x128xf32>
    %43 = vector.broadcast %42 : vector<1x128xf32> to vector<16x128xf32>
    %44 = arith.addf %41, %43 : vector<16x128xf32>
    %cst_11 = arith.constant 0.000000e+00 : f32
    %45 = vector.broadcast %cst_11 : f32 to vector<16x128xf32>
    %46 = arith.maximumf %44, %45 : vector<16x128xf32>
    %47 = arith.truncf %46 : vector<16x128xf32> to vector<16x128xbf16>
    %c0_12 = arith.constant 0 : index
    %c0_13 = arith.constant 0 : index
    %48 = vector.load %arg6[%c0_12, %c0_13] : memref<128x128xbf16, #tpu.memory_space<vmem>>, vector<128x128xbf16>
    %cst_14 = arith.constant dense<0.000000e+00> : vector<16x128xf32>
    %49 = tpu.matmul %47, %48, %cst_14 {dimension_numbers = #tpu.dot_dimension_numbers<[1], [0], [0], [1], [0, 0, 1, 1], [], []>} : vector<16x128xbf16>, vector<128x128xbf16>, vector<16x128xf32> -> vector<16x128xf32>
    %c0_15 = arith.constant 0 : index
    %c0_16 = arith.constant 0 : index
    %50 = vector.load %arg7[%c0_15, %c0_16] : memref<1x128xf32, #tpu.memory_space<vmem>>, vector<1x128xf32>
    %51 = vector.broadcast %50 : vector<1x128xf32> to vector<16x128xf32>
    %52 = arith.addf %49, %51 : vector<16x128xf32>
    %cst_17 = arith.constant dense<0xFF800000> : vector<16xf32>
    %53 = vector.multi_reduction <maximumf>, %52, %cst_17 [1] : vector<16x128xf32> to vector<16xf32>
    %54 = vector.shape_cast %53 : vector<16xf32> to vector<16x1xf32>
    %55 = vector.broadcast %54 : vector<16x1xf32> to vector<16x128xf32>
    %56 = arith.subf %52, %55 : vector<16x128xf32>
    %57 = math.exp %56 : vector<16x128xf32>
    %cst_18 = arith.constant dense<0.000000e+00> : vector<16xf32>
    %58 = vector.multi_reduction <add>, %57, %cst_18 [1] : vector<16x128xf32> to vector<16xf32>
    %59 = vector.shape_cast %58 : vector<16xf32> to vector<16x1xf32>
    %60 = math.log %59 : vector<16x1xf32>
    %61 = arith.addf %54, %60 : vector<16x1xf32>
    %62 = vector.broadcast %61 : vector<16x1xf32> to vector<16x128xf32>
    %63 = arith.subf %52, %62 : vector<16x128xf32>
    %c0_19 = arith.constant 0 : index
    %c0_20 = arith.constant 0 : index
    %64 = vector.load %arg8[%c0_19, %c0_20] : memref<16x128xf32, #tpu.memory_space<vmem>>, vector<16x128xf32>
    tpu.vector_store %arg8[%c0_19, %c0_20], %63 {strides = array<i32>} : memref<16x128xf32, #tpu.memory_space<vmem>>, vector<16x128xf32>,
    return
  }
  func.func @transform_0(%arg0: i32) -> (i32, i32) {
    %c0_i32 = arith.constant 0 : i32
    %c0_i32_0 = arith.constant 0 : i32
    return %arg0, %c0_i32 : i32, i32
  }
  func.func @transform_1(%arg0: i32) -> (i32, i32) {
    %c0_i32 = arith.constant 0 : i32
    %c0_i32_0 = arith.constant 0 : i32
    %c0_i32_1 = arith.constant 0 : i32
    return %c0_i32, %c0_i32_0 : i32, i32
  }
  func.func @transform_2(%arg0: i32) -> (i32, i32) {
    %c0_i32 = arith.constant 0 : i32
    %c0_i32_0 = arith.constant 0 : i32
    %c0_i32_1 = arith.constant 0 : i32
    return %c0_i32, %c0_i32_0 : i32, i32
  }
  func.func @transform_3(%arg0: i32) -> (i32, i32) {
    %c0_i32 = arith.constant 0 : i32
    %c0_i32_0 = arith.constant 0 : i32
    %c0_i32_1 = arith.constant 0 : i32
    return %c0_i32, %c0_i32_0 : i32, i32
  }
  func.func @transform_4(%arg0: i32) -> (i32, i32) {
    %c0_i32 = arith.constant 0 : i32
    %c0_i32_0 = arith.constant 0 : i32
    %c0_i32_1 = arith.constant 0 : i32
    return %c0_i32, %c0_i32_0 : i32, i32
  }
  func.func @transform_5(%arg0: i32) -> (i32, i32) {
    %c0_i32 = arith.constant 0 : i32
    %c0_i32_0 = arith.constant 0 : i32
    %c0_i32_1 = arith.constant 0 : i32
    return %c0_i32, %c0_i32_0 : i32, i32
  }
  func.func @transform_6(%arg0: i32) -> (i32, i32) {
    %c0_i32 = arith.constant 0 : i32
    %c0_i32_0 = arith.constant 0 : i32
    %c0_i32_1 = arith.constant 0 : i32
    return %c0_i32, %c0_i32_0 : i32, i32
  }
  func.func @transform_7(%arg0: i32) -> (i32, i32) {
    %c0_i32 = arith.constant 0 : i32
    %c0_i32_0 = arith.constant 0 : i32
    return %arg0, %c0_i32 : i32, i32
  }
}

</mosaic_0001>

<llo_original>
// kernel: tpu_custom_call.1
$region0: #{tpu_custom_call.1}
  #allocation0 [shape = 'u32[]', space=smem, size = 0x4, offset = 0x4, fixed_abs, tag = 'smem constant byte address 0x4 - core index']
  #allocation1 [shape = 'u32[144,128]{1,0:T(1,128)}', space=vmem, size = 0x12000, scoped, tag = 'internal scratch']
  %s0 = inlined_call_operand.vmem [shape: s32[32,5], index: 0, kind: input, shape index: {}]
  %s1 = inlined_call_operand.hbm [shape: bf16[640,128], index: 1, kind: input, shape index: {}]
  %s2 = inlined_call_operand.vmem [shape: f32[1,128], index: 2, kind: input, shape index: {}]
  %s3 = inlined_call_operand.hbm [shape: bf16[128,128], index: 3, kind: input, shape index: {}]
  %s4 = inlined_call_operand.vmem [shape: f32[1,128], index: 4, kind: input, shape index: {}]
  %s5 = inlined_call_operand.hbm [shape: bf16[128,128], index: 5, kind: input, shape index: {}]
  %s6 = inlined_call_operand.vmem [shape: f32[1,128], index: 6, kind: input, shape index: {}]
  %s7 = inlined_call_operand.hbm [shape: f32[32,128], index: 7, kind: output, shape index: {}]
  %s8 = sld [smem:[#allocation0]]
  $region73: #{tpu_custom_call.1} parent=0
    _
  %s10 = ssub.s32 1, %s8
  %s11 = scalar_select 0, %s10, %s8
  $region1: #{tpu_custom_call.1} parent=0
    #allocation2 [shape = 'u8[163840]{0}', space=vmem, size = 0x28000, scoped, tag = 'input window, operand 1, single buffered']
    #allocation3 [shape = 's32[2]{0}', space=sflag, size = 0x8, scoped, tag = 'scoped memory for tpu_custom_call.1']
    #allocation4 [shape = 's32[2]{0}', space=sflag, size = 0x8, scoped, tag = 'scoped memory for tpu_custom_call.1']
    #allocation5 [shape = 'u8[32768]{0}', space=vmem, size = 0x8000, scoped, tag = 'input window, operand 3, single buffered']
    #allocation6 [shape = 's32[1]{0}', space=sflag, size = 0x4, scoped, tag = 'scoped memory for tpu_custom_call.1']
    #allocation7 [shape = 'u8[32768]{0}', space=vmem, size = 0x8000, scoped, tag = 'input window, operand 5, single buffered']
    #allocation8 [shape = 'u8[16384]{0}', space=vmem, size = 0x4000, scoped, tag = 'output window, operand 0']
    %12 = vsyncpa [#allocation3], 0
    %13 = vsyncpa [#allocation6], 0
    %14 = vsyncpa [#allocation4], 0
    %s15 = scalar_lea.sflag [#allocation4], 1
    %16 = vsyncpa %s15, 0
    loop: start=0, step=1, limit=4
    $region2: #{tpu_custom_call.1} parent=1 // loop_pre_header
      _
    $region3: #{tpu_custom_call.1} parent=1 // loop_header
      %s18 = sphi 0, %s22
      %p19 = scmp.ge.s32.totalorder %s18, 4
      %s28 = sphi 0, %s30
      %s31 = sphi 0, %s28
      %s32 = sphi 0, %s31
      %s48 = sphi 0, %s32
      %s52 = sphi 0, %s52
      %s54 = sphi 0, %s52
      %s55 = sphi 0, %s54
      %s69 = sphi 0, %s55
      %s73 = sphi 0, %s73
      %s75 = sphi 0, %s73
      %s76 = sphi 0, %s75
      %s90 = sphi 0, %s76
      %s94 = sphi 0, %s94
      %s96 = sphi 0, %s94
      %s97 = sphi 0, %s96
      %s111 = sphi 0, %s97
      %s115 = sphi 0, %s115
      %s117 = sphi 0, %s115
      %s118 = sphi 0, %s117
      %s132 = sphi 0, %s118
      %s136 = sphi 0, %s136
      %s138 = sphi 0, %s136
      %s139 = sphi 0, %s138
      %s153 = sphi 0, %s139
      %s157 = sphi 0, %s157
      %s159 = sphi 0, %s157
      %s160 = sphi 0, %s159
      %s174 = sphi 0, %s160
      %s180 = sphi 0, %s182
      %s183 = sphi 0, %s180
      %s184 = sphi 0, %s183
      %s200 = sphi 0, %s184
    $region4: #{tpu_custom_call.1} parent=1 // loop_header_branch
      %21 = sbr.rel (%p19) target = $region8
    $region5: #{tpu_custom_call.1} parent=1 // loop_body
      %s23 = ssub.s32 %s18, 1
      %s24 = ssub.s32 %s18, 2
      %s25 = sadd.s32 %s18, 1
      %s26 = ssub.s32 %s18, %s25
      %p27 = scmp.eq.s32.totalorder %s26, 0
      %s29 = sadd.s32 %s28, 1
      %s30 = scalar_select %p27, %s28, %s29
      %p33 = pneg %p27
      %p34 = scmp.eq.s32.totalorder %s18, 1
      %p35 = por %p33, %p34
      %p36 = scmp.ne.s32.totalorder %s28, %s31
      %p37 = scmp.eq.s32.totalorder %s18, 0
      %p38 = por %p36, %p37
      %p39 = scmp.ne.s32.totalorder %s28, %s31
      %p40 = scmp.eq.s32.totalorder %s23, 1
      %p41 = por %p39, %p40
      %p42 = scmp.ne.s32.totalorder %s31, %s32
      %p43 = scmp.eq.s32.totalorder %s23, 0
      %p44 = por %p42, %p43
      %p45 = scmp.ne.s32.totalorder %s31, %s32
      %p46 = scmp.eq.s32.totalorder %s24, 1
      %p47 = por %p45, %p46
      %p49 = scmp.ne.s32.totalorder %s32, %s48
      %p50 = scmp.eq.s32.totalorder %s24, 0
      %p51 = por %p49, %p50
      %s53 = sadd.s32 %s52, 1
      %p56 = scmp.eq.s32.totalorder %s18, 1
      %p57 = scmp.ne.s32.totalorder %s52, %s54
      %p58 = scmp.eq.s32.totalorder %s18, 0
      %p59 = por %p57, %p58
      %p60 = scmp.ne.s32.totalorder %s52, %s54
      %p61 = scmp.eq.s32.totalorder %s23, 1
      %p62 = por %p60, %p61
      %p63 = scmp.ne.s32.totalorder %s54, %s55
      %p64 = scmp.eq.s32.totalorder %s23, 0
      %p65 = por %p63, %p64
      %p66 = scmp.ne.s32.totalorder %s54, %s55
      %p67 = scmp.eq.s32.totalorder %s24, 1
      %p68 = por %p66, %p67
      %p70 = scmp.ne.s32.totalorder %s55, %s69
      %p71 = scmp.eq.s32.totalorder %s24, 0
      %p72 = por %p70, %p71
      %s74 = sadd.s32 %s73, 1
      %p77 = scmp.eq.s32.totalorder %s18, 1
      %p78 = scmp.ne.s32.totalorder %s73, %s75
      %p79 = scmp.eq.s32.totalorder %s18, 0
      %p80 = por %p78, %p79
      %p81 = scmp.ne.s32.totalorder %s73, %s75
      %p82 = scmp.eq.s32.totalorder %s23, 1
      %p83 = por %p81, %p82
      %p84 = scmp.ne.s32.totalorder %s75, %s76
      %p85 = scmp.eq.s32.totalorder %s23, 0
      %p86 = por %p84, %p85
      %p87 = scmp.ne.s32.totalorder %s75, %s76
      %p88 = scmp.eq.s32.totalorder %s24, 1
      %p89 = por %p87, %p88
      %p91 = scmp.ne.s32.totalorder %s76, %s90
      %p92 = scmp.eq.s32.totalorder %s24, 0
      %p93 = por %p91, %p92
      %s95 = sadd.s32 %s94, 1
      %p98 = scmp.eq.s32.totalorder %s18, 1
      %p99 = scmp.ne.s32.totalorder %s94, %s96
      %p100 = scmp.eq.s32.totalorder %s18, 0
      %p101 = por %p99, %p100
      %p102 = scmp.ne.s32.totalorder %s94, %s96
      %p103 = scmp.eq.s32.totalorder %s23, 1
      %p104 = por %p102, %p103
      %p105 = scmp.ne.s32.totalorder %s96, %s97
      %p106 = scmp.eq.s32.totalorder %s23, 0
      %p107 = por %p105, %p106
      %p108 = scmp.ne.s32.totalorder %s96, %s97
      %p109 = scmp.eq.s32.totalorder %s24, 1
      %p110 = por %p108, %p109
      %p112 = scmp.ne.s32.totalorder %s97, %s111
      %p113 = scmp.eq.s32.totalorder %s24, 0
      %p114 = por %p112, %p113
      %s116 = sadd.s32 %s115, 1
      %p119 = scmp.eq.s32.totalorder %s18, 1
      %p120 = scmp.ne.s32.totalorder %s115, %s117
      %p121 = scmp.eq.s32.totalorder %s18, 0
      %p122 = por %p120, %p121
      %p123 = scmp.ne.s32.totalorder %s115, %s117
      %p124 = scmp.eq.s32.totalorder %s23, 1
      %p125 = por %p123, %p124
      %p126 = scmp.ne.s32.totalorder %s117, %s118
      %p127 = scmp.eq.s32.totalorder %s23, 0
      %p128 = por %p126, %p127
      %p129 = scmp.ne.s32.totalorder %s117, %s118
      %p130 = scmp.eq.s32.totalorder %s24, 1
      %p131 = por %p129, %p130
      %p133 = scmp.ne.s32.totalorder %s118, %s132
      %p134 = scmp.eq.s32.totalorder %s24, 0
      %p135 = por %p133, %p134
      %s137 = sadd.s32 %s136, 1
      %p140 = scmp.eq.s32.totalorder %s18, 1
      %p141 = scmp.ne.s32.totalorder %s136, %s138
      %p142 = scmp.eq.s32.totalorder %s18, 0
      %p143 = por %p141, %p142
      %p144 = scmp.ne.s32.totalorder %s136, %s138
      %p145 = scmp.eq.s32.totalorder %s23, 1
      %p146 = por %p144, %p145
      %p147 = scmp.ne.s32.totalorder %s138, %s139
      %p148 = scmp.eq.s32.totalorder %s23, 0
      %p149 = por %p147, %p148
      %p150 = scmp.ne.s32.totalorder %s138, %s139
      %p151 = scmp.eq.s32.totalorder %s24, 1
      %p152 = por %p150, %p151
      %p154 = scmp.ne.s32.totalorder %s139, %s153
      %p155 = scmp.eq.s32.totalorder %s24, 0
      %p156 = por %p154, %p155
      %s158 = sadd.s32 %s157, 1
      %p161 = scmp.eq.s32.totalorder %s18, 1
      %p162 = scmp.ne.s32.totalorder %s157, %s159
      %p163 = scmp.eq.s32.totalorder %s18, 0
      %p164 = por %p162, %p163
      %p165 = scmp.ne.s32.totalorder %s157, %s159
      %p166 = scmp.eq.s32.totalorder %s23, 1
      %p167 = por %p165, %p166
      %p168 = scmp.ne.s32.totalorder %s159, %s160
      %p169 = scmp.eq.s32.totalorder %s23, 0
      %p170 = por %p168, %p169
      %p171 = scmp.ne.s32.totalorder %s159, %s160
      %p172 = scmp.eq.s32.totalorder %s24, 1
      %p173 = por %p171, %p172
      %p175 = scmp.ne.s32.totalorder %s160, %s174
      %p176 = scmp.eq.s32.totalorder %s24, 0
      %p177 = por %p175, %p176
      %s178 = ssub.s32 %s18, %s25
      %p179 = scmp.eq.s32.totalorder %s178, 0
      %s181 = sadd.s32 %s180, 1
      %s182 = scalar_select %p179, %s180, %s181
      %p185 = pneg %p179
      %p186 = scmp.eq.s32.totalorder %s18, 1
      %p187 = por %p185, %p186
      %p188 = scmp.ne.s32.totalorder %s180, %s183
      %p189 = scmp.eq.s32.totalorder %s18, 0
      %p190 = por %p188, %p189
      %p191 = scmp.ne.s32.totalorder %s180, %s183
      %p192 = scmp.eq.s32.totalorder %s23, 1
      %p193 = por %p191, %p192
      %p194 = scmp.ne.s32.totalorder %s183, %s184
      %p195 = scmp.eq.s32.totalorder %s23, 0
      %p196 = por %p194, %p195
      %p197 = scmp.ne.s32.totalorder %s183, %s184
      %p198 = scmp.eq.s32.totalorder %s24, 1
      %p199 = por %p197, %p198
      %p201 = scmp.ne.s32.totalorder %s184, %s200
      %p202 = scmp.eq.s32.totalorder %s24, 0
      %p203 = por %p201, %p202
      %p204 = scmp.le.s32.totalorder 1, %s18
      %p205 = scmp.lt.s32.totalorder %s18, 3
      %p206 = pnand %p204, %p205
      %p207 = pneg %p206
      // Predicated region
      $region9: #{tpu_custom_call.1} parent=5 // pred_check
        _
      $region10: #{tpu_custom_call.1} parent=5 // pred_check_branch
        %209 = sbr.rel (%p206) target = $region12
      $region11: #{tpu_custom_call.1} parent=5 // pred_region
        %s210 = ssub.s32 %s18, 1
        // Predicated region
        $region13: #{tpu_custom_call.1} parent=11 // pred_check
          %p211 = pneg %p65
        $region14: #{tpu_custom_call.1} parent=11 // pred_check_branch
          %213 = sbr.rel (%p211) target = $region16
        $region15: #{tpu_custom_call.1} parent=11 // pred_region
          %s215 = ssub.s32 5120, 5120
          %216 = vsyncadd [#allocation3], %s215
          %s217 = sshll.u32 [#allocation2], 4
          %s218 = int_to_ptr.vmem [resolvable:$true] %s217
          %223 = dma.hbm_to_vmem [thread:$0]  %s1, 5120, %s218, [#allocation3], 64, 64, 4
        $region16: #{tpu_custom_call.1} parent=11 // pred_fallthru
          _
        // Predicated region
        $region17: #{tpu_custom_call.1} parent=11 // pred_check
          %p224 = pneg %p86
        $region18: #{tpu_custom_call.1} parent=11 // pred_check_branch
          %226 = sbr.rel (%p224) target = $region20
        $region19: #{tpu_custom_call.1} parent=11 // pred_region
          _
        $region20: #{tpu_custom_call.1} parent=11 // pred_fallthru
          _
        // Predicated region
        $region21: #{tpu_custom_call.1} parent=11 // pred_check
          %p227 = pneg %p107
        $region22: #{tpu_custom_call.1} parent=11 // pred_check_branch
          %229 = sbr.rel (%p227) target = $region24
        $region23: #{tpu_custom_call.1} parent=11 // pred_region
          %s231 = ssub.s32 1024, 1024
          %232 = vsyncadd [#allocation6], %s231
          %s233 = sshll.u32 [#allocation5], 4
          %s234 = int_to_ptr.vmem [resolvable:$true] %s233
          %239 = dma.hbm_to_vmem [thread:$0]  %s3, 1024, %s234, [#allocation6], 64, 64, 4
        $region24: #{tpu_custom_call.1} parent=11 // pred_fallthru
          _
        // Predicated region
        $region25: #{tpu_custom_call.1} parent=11 // pred_check
          %p240 = pneg %p128
        $region26: #{tpu_custom_call.1} parent=11 // pred_check_branch
          %242 = sbr.rel (%p240) target = $region28
        $region27: #{tpu_custom_call.1} parent=11 // pred_region
          _
        $region28: #{tpu_custom_call.1} parent=11 // pred_fallthru
          _
        // Predicated region
        $region29: #{tpu_custom_call.1} parent=11 // pred_check
          %p243 = pneg %p149
        $region30: #{tpu_custom_call.1} parent=11 // pred_check_branch
          %245 = sbr.rel (%p243) target = $region32
        $region31: #{tpu_custom_call.1} parent=11 // pred_region
          %s247 = ssub.s32 1024, 1024
          %248 = vsyncadd [#allocation6], %s247
          %s249 = sshll.u32 [#allocation7], 4
          %s250 = int_to_ptr.vmem [resolvable:$true] %s249
          %255 = dma.hbm_to_vmem [thread:$0]  %s5, 1024, %s250, [#allocation6], 64, 64, 4
        $region32: #{tpu_custom_call.1} parent=11 // pred_fallthru
          _
        // Predicated region
        $region33: #{tpu_custom_call.1} parent=11 // pred_check
          %p256 = pneg %p170
        $region34: #{tpu_custom_call.1} parent=11 // pred_check_branch
          %258 = sbr.rel (%p256) target = $region36
        $region35: #{tpu_custom_call.1} parent=11 // pred_region
          _
        $region36: #{tpu_custom_call.1} parent=11 // pred_fallthru
          _
      $region12: #{tpu_custom_call.1} parent=5 // pred_fallthru
        _
      %p259 = scmp.lt.s32.totalorder %s18, 2
      // Predicated region
      $region37: #{tpu_custom_call.1} parent=5 // pred_check
        %p260 = pneg %p259
      $region38: #{tpu_custom_call.1} parent=5 // pred_check_branch
        %262 = sbr.rel (%p260) target = $region40
      $region39: #{tpu_custom_call.1} parent=5 // pred_region
        // Predicated region
        $region41: #{tpu_custom_call.1} parent=39 // pred_check
          %p263 = pneg %p38
        $region42: #{tpu_custom_call.1} parent=39 // pred_check_branch
          %265 = sbr.rel (%p263) target = $region44
        $region43: #{tpu_custom_call.1} parent=39 // pred_region
          %s266 = smul.u32 2, %s18
          %p267 = scmp.lt.s32.totalorder %s266, 3
          %s268 = scalar_select %p267, %s266, 3
          %s269 = smul.addr %s268, 8
          %s270 = scalar_lea.vmem %s0, %s269
          %s271 = smul.u32 2, %s18
        $region44: #{tpu_custom_call.1} parent=39 // pred_fallthru
          _
      $region40: #{tpu_custom_call.1} parent=5 // pred_fallthru
        _
      %p272 = scmp.le.s32.totalorder 1, %s18
      %p273 = scmp.lt.s32.totalorder %s18, 3
      %p274 = pnand %p272, %p273
      %p275 = pneg %p274
      // Predicated region
      $region45: #{tpu_custom_call.1} parent=5 // pred_check
        _
      $region46: #{tpu_custom_call.1} parent=5 // pred_check_branch
        %277 = sbr.rel (%p274) target = $region48
      $region47: #{tpu_custom_call.1} parent=5 // pred_region
        %s278 = ssub.s32 %s18, 1
        // Predicated region
        $region49: #{tpu_custom_call.1} parent=47 // pred_check
          %p279 = pneg %p65
        $region50: #{tpu_custom_call.1} parent=47 // pred_check_branch
          %281 = sbr.rel (%p279) target = $region52
        $region51: #{tpu_custom_call.1} parent=47 // pred_region
          %282 = dma.done [#allocation3], 5120
        $region52: #{tpu_custom_call.1} parent=47 // pred_fallthru
          _
        // Predicated region
        $region53: #{tpu_custom_call.1} parent=47 // pred_check
          %p283 = pneg %p107
        $region54: #{tpu_custom_call.1} parent=47 // pred_check_branch
          %285 = sbr.rel (%p283) target = $region56
        $region55: #{tpu_custom_call.1} parent=47 // pred_region
          %286 = dma.done [#allocation6], 1024
        $region56: #{tpu_custom_call.1} parent=47 // pred_fallthru
          _
        // Predicated region
        $region57: #{tpu_custom_call.1} parent=47 // pred_check
          %p287 = pneg %p149
        $region58: #{tpu_custom_call.1} parent=47 // pred_check_branch
          %289 = sbr.rel (%p287) target = $region60
        $region59: #{tpu_custom_call.1} parent=47 // pred_region
          %290 = dma.done [#allocation6], 1024
        $region60: #{tpu_custom_call.1} parent=47 // pred_fallthru
          _
        %s291 = smul.u32 2, %s23
        %p292 = scmp.lt.s32.totalorder %s291, 3
        %s293 = scalar_select %p292, %s291, 3
        %s294 = smul.addr %s293, 8
        %s295 = scalar_lea.vmem %s0, %s294
        %p296 = pneg %p44
        %p297 = pneg %p41
        %p298 = pneg %p65
        %p299 = pneg %p62
        %p300 = pneg %p86
        %p301 = pneg %p83
        %p302 = pneg %p107
        %p303 = pneg %p104
        %p304 = pneg %p128
        %p305 = pneg %p125
        %p306 = pneg %p149
        %p307 = pneg %p146
        %p308 = pneg %p170
        %p309 = pneg %p167
        %p310 = pneg %p196
        %p311 = pneg %p193
        %s312 = sand.u32 %s183, 1
        %s313 = scalar_lea.sflag [#allocation4], %s312
        %s314 = sand.u32 %s183, 1
        %s315 = smul.addr %s314, 16
        %s316 = scalar_lea.vmem [#allocation8], %s315
        %s317 = smul.u32 2, %s23
        %p318 = scmp.lt.s32.totalorder %s317, 3
        %s319 = scalar_select %p318, %s317, 3
        %s320 = smul.addr %s319, 8
        %s321 = scalar_lea.vmem %s0, %s320
        %s322 = smul.u32 2, %s23
        %s323 = smul.u32 2, %s23
        %v325 = vld [vmem:[%s321] sm:$0xff]
        %v326 = vld [vmem:[%s321 + $0x8] sm:$0xff]
        %v327 = vlaneseq
        %v328 = vand.u32 %v327, 127
        %v329 = vadd.s32 %v328, 128
        %v330 = vadd.s32 %v328, 256
        %v331 = vadd.s32 %v328, 384
        %v332 = vadd.s32 %v328, 512
        %333 = vset.pattern.permute.xlu0 0
        %334 = vperm.xlu0 %333, %v325
        %v335 = vpop.permute.xlu0 %334
        %336 = vset.pattern.permute.xlu0 0
        %337 = vperm.xlu0 %336, %v326
        %v338 = vpop.permute.xlu0 %337
        %vm339 = vcmp.eq.s32.totalorder %v328, %v335
        %vm340 = vcmp.eq.s32.totalorder %v329, %v335
        %vm341 = vcmp.eq.s32.totalorder %v330, %v335
        %vm342 = vcmp.eq.s32.totalorder %v331, %v335
        %vm343 = vcmp.eq.s32.totalorder %v332, %v335
        %vm344 = vcmp.eq.s32.totalorder %v328, %v338
        %vm345 = vcmp.eq.s32.totalorder %v329, %v338
        %vm346 = vcmp.eq.s32.totalorder %v330, %v338
        %vm347 = vcmp.eq.s32.totalorder %v331, %v338
        %vm348 = vcmp.eq.s32.totalorder %v332, %v338
        %v349 = vadd.s32 %v325, 128
        %v350 = vadd.s32 %v326, 128
        %351 = vset.pattern.permute.xlu0 1
        %352 = vperm.xlu0 %351, %v349
        %v353 = vpop.permute.xlu0 %352
        %354 = vset.pattern.permute.xlu0 1
        %355 = vperm.xlu0 %354, %v350
        %v356 = vpop.permute.xlu0 %355
        %vm357 = vcmp.eq.s32.totalorder %v328, %v353
        %vm358 = vcmp.eq.s32.totalorder %v329, %v353
        %vm359 = vcmp.eq.s32.totalorder %v330, %v353
        %vm360 = vcmp.eq.s32.totalorder %v331, %v353
        %vm361 = vcmp.eq.s32.totalorder %v332, %v353
        %vm362 = vcmp.eq.s32.totalorder %v328, %v356
        %vm363 = vcmp.eq.s32.totalorder %v329, %v356
        %vm364 = vcmp.eq.s32.totalorder %v330, %v356
        %vm365 = vcmp.eq.s32.totalorder %v331, %v356
        %vm366 = vcmp.eq.s32.totalorder %v332, %v356
        %vm367 = vmor %vm339, %vm357
        %vm368 = vmor %vm340, %vm358
        %vm369 = vmor %vm341, %vm359
        %vm370 = vmor %vm342, %vm360
        %vm371 = vmor %vm343, %vm361
        %vm372 = vmor %vm344, %vm362
        %vm373 = vmor %vm345, %vm363
        %vm374 = vmor %vm346, %vm364
        %vm375 = vmor %vm347, %vm365
        %vm376 = vmor %vm348, %vm366
        %v377 = vadd.s32 %v325, 256
        %v378 = vadd.s32 %v326, 256
        %379 = vset.pattern.permute.xlu0 2
        %380 = vperm.xlu0 %379, %v377
        %v381 = vpop.permute.xlu0 %380
        %382 = vset.pattern.permute.xlu0 2
        %383 = vperm.xlu0 %382, %v378
        %v384 = vpop.permute.xlu0 %383
        %vm385 = vcmp.eq.s32.totalorder %v328, %v381
        %vm386 = vcmp.eq.s32.totalorder %v329, %v381
        %vm387 = vcmp.eq.s32.totalorder %v330, %v381
        %vm388 = vcmp.eq.s32.totalorder %v331, %v381
        %vm389 = vcmp.eq.s32.totalorder %v332, %v381
        %vm390 = vcmp.eq.s32.totalorder %v328, %v384
        %vm391 = vcmp.eq.s32.totalorder %v329, %v384
        %vm392 = vcmp.eq.s32.totalorder %v330, %v384
        %vm393 = vcmp.eq.s32.totalorder %v331, %v384
        %vm394 = vcmp.eq.s32.totalorder %v332, %v384
        %vm395 = vmor %vm367, %vm385
        %vm396 = vmor %vm368, %vm386
        %vm397 = vmor %vm369, %vm387
        %vm398 = vmor %vm370, %vm388
        %vm399 = vmor %vm371, %vm389
        %vm400 = vmor %vm372, %vm390
        %vm401 = vmor %vm373, %vm391
        %vm402 = vmor %vm374, %vm392
        %vm403 = vmor %vm375, %vm393
        %vm404 = vmor %vm376, %vm394
        %v405 = vadd.s32 %v325, 384
        %v406 = vadd.s32 %v326, 384
        %407 = vset.pattern.permute.xlu0 3
        %408 = vperm.xlu0 %407, %v405
        %v409 = vpop.permute.xlu0 %408
        %410 = vset.pattern.permute.xlu0 3
        %411 = vperm.xlu0 %410, %v406
        %v412 = vpop.permute.xlu0 %411
        %vm413 = vcmp.eq.s32.totalorder %v328, %v409
        %vm414 = vcmp.eq.s32.totalorder %v329, %v409
        %vm415 = vcmp.eq.s32.totalorder %v330, %v409
        %vm416 = vcmp.eq.s32.totalorder %v331, %v409
        %vm417 = vcmp.eq.s32.totalorder %v332, %v409
        %vm418 = vcmp.eq.s32.totalorder %v328, %v412
        %vm419 = vcmp.eq.s32.totalorder %v329, %v412
        %vm420 = vcmp.eq.s32.totalorder %v330, %v412
        %vm421 = vcmp.eq.s32.totalorder %v331, %v412
        %vm422 = vcmp.eq.s32.totalorder %v332, %v412
        %vm423 = vmor %vm395, %vm413
        %vm424 = vmor %vm396, %vm414
        %vm425 = vmor %vm397, %vm415
        %vm426 = vmor %vm398, %vm416
        %vm427 = vmor %vm399, %vm417
        %vm428 = vmor %vm400, %vm418
        %vm429 = vmor %vm401, %vm419
        %vm430 = vmor %vm402, %vm420
        %vm431 = vmor %vm403, %vm421
        %vm432 = vmor %vm404, %vm422
        %v433 = vadd.s32 %v325, 512
        %v434 = vadd.s32 %v326, 512
        %435 = vset.pattern.permute.xlu0 4
        %436 = vperm.xlu0 %435, %v433
        %v437 = vpop.permute.xlu0 %436
        %438 = vset.pattern.permute.xlu0 4
        %439 = vperm.xlu0 %438, %v434
        %v440 = vpop.permute.xlu0 %439
        %vm441 = vcmp.eq.s32.totalorder %v328, %v437
        %vm442 = vcmp.eq.s32.totalorder %v329, %v437
        %vm443 = vcmp.eq.s32.totalorder %v330, %v437
        %vm444 = vcmp.eq.s32.totalorder %v331, %v437
        %vm445 = vcmp.eq.s32.totalorder %v332, %v437
        %vm446 = vcmp.eq.s32.totalorder %v328, %v440
        %vm447 = vcmp.eq.s32.totalorder %v329, %v440
        %vm448 = vcmp.eq.s32.totalorder %v330, %v440
        %vm449 = vcmp.eq.s32.totalorder %v331, %v440
        %vm450 = vcmp.eq.s32.totalorder %v332, %v440
        %vm451 = vmor %vm423, %vm441
        %vm452 = vmor %vm424, %vm442
        %vm453 = vmor %vm425, %vm443
        %vm454 = vmor %vm426, %vm444
        %vm455 = vmor %vm427, %vm445
        %vm456 = vmor %vm428, %vm446
        %vm457 = vmor %vm429, %vm447
        %vm458 = vmor %vm430, %vm448
        %vm459 = vmor %vm431, %vm449
        %vm460 = vmor %vm432, %vm450
        %v461 = vsel %vm451, 1, 0
        %v462 = vsel %vm452, 1, 0
        %v463 = vsel %vm453, 1, 0
        %v464 = vsel %vm454, 1, 0
        %v465 = vsel %vm455, 1, 0
        %v466 = vsel %vm456, 1, 0
        %v467 = vsel %vm457, 1, 0
        %v468 = vsel %vm458, 1, 0
        %v469 = vsel %vm459, 1, 0
        %v470 = vsel %vm460, 1, 0
        %v471 = vcvt.s32.f32 %v461
        %v472 = vcvt.s32.f32 %v462
        %v473 = vcvt.s32.f32 %v463
        %v474 = vcvt.s32.f32 %v464
        %v475 = vcvt.s32.f32 %v465
        %v476 = vcvt.s32.f32 %v466
        %v477 = vcvt.s32.f32 %v467
        %v478 = vcvt.s32.f32 %v468
        %v479 = vcvt.s32.f32 %v469
        %v480 = vcvt.s32.f32 %v470
        %v481 = vpack.c.bf16 %v476, %v471
        %v482 = vpack.c.bf16 %v477, %v472
        %v483 = vpack.c.bf16 %v478, %v473
        %v484 = vpack.c.bf16 %v479, %v474
        %v485 = vpack.c.bf16 %v480, %v475
        %v486 = vld [vmem:[#allocation2] sm:$0xf]
        %v487 = vld [vmem:[#allocation2 + $0x4] sm:$0xf]
        %v488 = vld [vmem:[#allocation2 + $0x8] sm:$0xf]
        %v489 = vld [vmem:[#allocation2 + $0xc] sm:$0xf]
        %v490 = vld [vmem:[#allocation2 + $0x10] sm:$0xf]
        %v491 = vld [vmem:[#allocation2 + $0x14] sm:$0xf]
        %v492 = vld [vmem:[#allocation2 + $0x18] sm:$0xf]
        %v493 = vld [vmem:[#allocation2 + $0x1c] sm:$0xf]
        %v494 = vld [vmem:[#allocation2 + $0x20] sm:$0xf]
        %v495 = vld [vmem:[#allocation2 + $0x24] sm:$0xf]
        %v496 = vld [vmem:[#allocation2 + $0x28] sm:$0xf]
        %v497 = vld [vmem:[#allocation2 + $0x2c] sm:$0xf]
        %v498 = vld [vmem:[#allocation2 + $0x30] sm:$0xf]
        %v499 = vld [vmem:[#allocation2 + $0x34] sm:$0xf]
        %v500 = vld [vmem:[#allocation2 + $0x38] sm:$0xf]
        %v501 = vld [vmem:[#allocation2 + $0x3c] sm:$0xf]
        %v502 = vld [vmem:[#allocation2 + $0x40] sm:$0xf]
        %v503 = vld [vmem:[#allocation2 + $0x44] sm:$0xf]
        %v504 = vld [vmem:[#allocation2 + $0x48] sm:$0xf]
        %v505 = vld [vmem:[#allocation2 + $0x4c] sm:$0xf]
        %v506 = vld [vmem:[#allocation2 + $0x50] sm:$0xf]
        %v507 = vld [vmem:[#allocation2 + $0x54] sm:$0xf]
        %v508 = vld [vmem:[#allocation2 + $0x58] sm:$0xf]
        %v509 = vld [vmem:[#allocation2 + $0x5c] sm:$0xf]
        %v510 = vld [vmem:[#allocation2 + $0x60] sm:$0xf]
        %v511 = vld [vmem:[#allocation2 + $0x64] sm:$0xf]
        %v512 = vld [vmem:[#allocation2 + $0x68] sm:$0xf]
        %v513 = vld [vmem:[#allocation2 + $0x6c] sm:$0xf]
        %v514 = vld [vmem:[#allocation2 + $0x70] sm:$0xf]
        %v515 = vld [vmem:[#allocation2 + $0x74] sm:$0xf]
        %v516 = vld [vmem:[#allocation2 + $0x78] sm:$0xf]
        %v517 = vld [vmem:[#allocation2 + $0x7c] sm:$0xf]
        %v518 = vld [vmem:[#allocation2 + $0x80] sm:$0xf]
        %v519 = vld [vmem:[#allocation2 + $0x84] sm:$0xf]
        %v520 = vld [vmem:[#allocation2 + $0x88] sm:$0xf]
        %v521 = vld [vmem:[#allocation2 + $0x8c] sm:$0xf]
        %v522 = vld [vmem:[#allocation2 + $0x90] sm:$0xf]
        %v523 = vld [vmem:[#allocation2 + $0x94] sm:$0xf]
        %v524 = vld [vmem:[#allocation2 + $0x98] sm:$0xf]
        %v525 = vld [vmem:[#allocation2 + $0x9c] sm:$0xf]
        %v526 = vld [vmem:[#allocation2 + $0xa0] sm:$0xf]
        %v527 = vld [vmem:[#allocation2 + $0xa4] sm:$0xf]
        %v528 = vld [vmem:[#allocation2 + $0xa8] sm:$0xf]
        %v529 = vld [vmem:[#allocation2 + $0xac] sm:$0xf]
        %v530 = vld [vmem:[#allocation2 + $0xb0] sm:$0xf]
        %v531 = vld [vmem:[#allocation2 + $0xb4] sm:$0xf]
        %v532 = vld [vmem:[#allocation2 + $0xb8] sm:$0xf]
        %v533 = vld [vmem:[#allocation2 + $0xbc] sm:$0xf]
        %v534 = vld [vmem:[#allocation2 + $0xc0] sm:$0xf]
        %v535 = vld [vmem:[#allocation2 + $0xc4] sm:$0xf]
        %v536 = vld [vmem:[#allocation2 + $0xc8] sm:$0xf]
        %v537 = vld [vmem:[#allocation2 + $0xcc] sm:$0xf]
        %v538 = vld [vmem:[#allocation2 + $0xd0] sm:$0xf]
        %v539 = vld [vmem:[#allocation2 + $0xd4] sm:$0xf]
        %v540 = vld [vmem:[#allocation2 + $0xd8] sm:$0xf]
        %v541 = vld [vmem:[#allocation2 + $0xdc] sm:$0xf]
        %v542 = vld [vmem:[#allocation2 + $0xe0] sm:$0xf]
        %v543 = vld [vmem:[#allocation2 + $0xe4] sm:$0xf]
        %v544 = vld [vmem:[#allocation2 + $0xe8] sm:$0xf]
        %v545 = vld [vmem:[#allocation2 + $0xec] sm:$0xf]
        %v546 = vld [vmem:[#allocation2 + $0xf0] sm:$0xf]
        %v547 = vld [vmem:[#allocation2 + $0xf4] sm:$0xf]
        %v548 = vld [vmem:[#allocation2 + $0xf8] sm:$0xf]
        %v549 = vld [vmem:[#allocation2 + $0xfc] sm:$0xf]
        %v550 = vld [vmem:[#allocation2 + $0x100] sm:$0xf]
        %v551 = vld [vmem:[#allocation2 + $0x104] sm:$0xf]
        %v552 = vld [vmem:[#allocation2 + $0x108] sm:$0xf]
        %v553 = vld [vmem:[#allocation2 + $0x10c] sm:$0xf]
        %v554 = vld [vmem:[#allocation2 + $0x110] sm:$0xf]
        %v555 = vld [vmem:[#allocation2 + $0x114] sm:$0xf]
        %v556 = vld [vmem:[#allocation2 + $0x118] sm:$0xf]
        %v557 = vld [vmem:[#allocation2 + $0x11c] sm:$0xf]
        %v558 = vld [vmem:[#allocation2 + $0x120] sm:$0xf]
        %v559 = vld [vmem:[#allocation2 + $0x124] sm:$0xf]
        %v560 = vld [vmem:[#allocation2 + $0x128] sm:$0xf]
        %v561 = vld [vmem:[#allocation2 + $0x12c] sm:$0xf]
        %v562 = vld [vmem:[#allocation2 + $0x130] sm:$0xf]
        %v563 = vld [vmem:[#allocation2 + $0x134] sm:$0xf]
        %v564 = vld [vmem:[#allocation2 + $0x138] sm:$0xf]
        %v565 = vld [vmem:[#allocation2 + $0x13c] sm:$0xf]
        %v566 = vld [vmem:[%s2] sm:$0x1]
        %v568 = vlaneseq
        %v569 = vshrl.u32 %v568, 7
        %v570 = vsub.s32 0, %v569
        %v571 = vrot.slane %v566, %v570
        %v653 = vunpack.c.l.b16 %v486
        %v654 = vunpack.c.l.b16 %v487
        %v655 = vunpack.c.l.b16 %v488
        %v656 = vunpack.c.l.b16 %v489
        %v657 = vunpack.c.l.b16 %v490
        %v658 = vunpack.c.l.b16 %v491
        %v659 = vunpack.c.l.b16 %v492
        %v660 = vunpack.c.l.b16 %v493
        %v661 = vunpack.c.l.b16 %v494
        %v662 = vunpack.c.l.b16 %v495
        %v663 = vunpack.c.l.b16 %v496
        %v664 = vunpack.c.l.b16 %v497
        %v665 = vunpack.c.l.b16 %v498
        %v666 = vunpack.c.l.b16 %v499
        %v667 = vunpack.c.l.b16 %v500
        %v668 = vunpack.c.l.b16 %v501
        %v669 = vunpack.c.l.b16 %v502
        %v670 = vunpack.c.l.b16 %v503
        %v671 = vunpack.c.l.b16 %v504
        %v672 = vunpack.c.l.b16 %v505
        %v673 = vunpack.c.l.b16 %v506
        %v674 = vunpack.c.l.b16 %v507
        %v675 = vunpack.c.l.b16 %v508
        %v676 = vunpack.c.l.b16 %v509
        %v677 = vunpack.c.l.b16 %v510
        %v678 = vunpack.c.l.b16 %v511
        %v679 = vunpack.c.l.b16 %v512
        %v680 = vunpack.c.l.b16 %v513
        %v681 = vunpack.c.l.b16 %v514
        %v682 = vunpack.c.l.b16 %v515
        %v683 = vunpack.c.l.b16 %v516
        %v684 = vunpack.c.l.b16 %v517
        %v685 = vunpack.c.l.b16 %v518
        %v686 = vunpack.c.l.b16 %v519
        %v687 = vunpack.c.l.b16 %v520
        %v688 = vunpack.c.l.b16 %v521
        %v689 = vunpack.c.l.b16 %v522
        %v690 = vunpack.c.l.b16 %v523
        %v691 = vunpack.c.l.b16 %v524
        %v692 = vunpack.c.l.b16 %v525
        %v693 = vunpack.c.l.b16 %v526
        %v694 = vunpack.c.l.b16 %v527
        %v695 = vunpack.c.l.b16 %v528
        %v696 = vunpack.c.l.b16 %v529
        %v697 = vunpack.c.l.b16 %v530
        %v698 = vunpack.c.l.b16 %v531
        %v699 = vunpack.c.l.b16 %v532
        %v700 = vunpack.c.l.b16 %v533
        %v701 = vunpack.c.l.b16 %v534
        %v702 = vunpack.c.l.b16 %v535
        %v703 = vunpack.c.l.b16 %v536
        %v704 = vunpack.c.l.b16 %v537
        %v705 = vunpack.c.l.b16 %v538
        %v706 = vunpack.c.l.b16 %v539
        %v707 = vunpack.c.l.b16 %v540
        %v708 = vunpack.c.l.b16 %v541
        %v709 = vunpack.c.l.b16 %v542
        %v710 = vunpack.c.l.b16 %v543
        %v711 = vunpack.c.l.b16 %v544
        %v712 = vunpack.c.l.b16 %v545
        %v713 = vunpack.c.l.b16 %v546
        %v714 = vunpack.c.l.b16 %v547
        %v715 = vunpack.c.l.b16 %v548
        %v716 = vunpack.c.l.b16 %v549
        %v717 = vunpack.c.l.b16 %v550
        %v718 = vunpack.c.l.b16 %v551
        %v719 = vunpack.c.l.b16 %v552
        %v720 = vunpack.c.l.b16 %v553
        %v721 = vunpack.c.l.b16 %v554
        %v722 = vunpack.c.l.b16 %v555
        %v723 = vunpack.c.l.b16 %v556
        %v724 = vunpack.c.l.b16 %v557
        %v725 = vunpack.c.l.b16 %v558
        %v726 = vunpack.c.l.b16 %v559
        %v727 = vunpack.c.l.b16 %v560
        %v728 = vunpack.c.l.b16 %v561
        %v729 = vunpack.c.l.b16 %v562
        %v730 = vunpack.c.l.b16 %v563
        %v731 = vunpack.c.l.b16 %v564
        %v732 = vunpack.c.l.b16 %v565
        %v733 = vpack.c.b16 %v654, %v653
        %v734 = vpack.c.b16 %v656, %v655
        %v735 = vpack.c.b16 %v658, %v657
        %v736 = vpack.c.b16 %v660, %v659
        %v737 = vpack.c.b16 %v662, %v661
        %v738 = vpack.c.b16 %v664, %v663
        %v739 = vpack.c.b16 %v666, %v665
        %v740 = vpack.c.b16 %v668, %v667
        %v741 = vpack.c.b16 %v670, %v669
        %v742 = vpack.c.b16 %v672, %v671
        %v743 = vpack.c.b16 %v674, %v673
        %v744 = vpack.c.b16 %v676, %v675
        %v745 = vpack.c.b16 %v678, %v677
        %v746 = vpack.c.b16 %v680, %v679
        %v747 = vpack.c.b16 %v682, %v681
        %v748 = vpack.c.b16 %v684, %v683
        %v749 = vpack.c.b16 %v686, %v685
        %v750 = vpack.c.b16 %v688, %v687
        %v751 = vpack.c.b16 %v690, %v689
        %v752 = vpack.c.b16 %v692, %v691
        %v753 = vpack.c.b16 %v694, %v693
        %v754 = vpack.c.b16 %v696, %v695
        %v755 = vpack.c.b16 %v698, %v697
        %v756 = vpack.c.b16 %v700, %v699
        %v757 = vpack.c.b16 %v702, %v701
        %v758 = vpack.c.b16 %v704, %v703
        %v759 = vpack.c.b16 %v706, %v705
        %v760 = vpack.c.b16 %v708, %v707
        %v761 = vpack.c.b16 %v710, %v709
        %v762 = vpack.c.b16 %v712, %v711
        %v763 = vpack.c.b16 %v714, %v713
        %v764 = vpack.c.b16 %v716, %v715
        %v765 = vpack.c.b16 %v718, %v717
        %v766 = vpack.c.b16 %v720, %v719
        %v767 = vpack.c.b16 %v722, %v721
        %v768 = vpack.c.b16 %v724, %v723
        %v769 = vpack.c.b16 %v726, %v725
        %v770 = vpack.c.b16 %v728, %v727
        %v771 = vpack.c.b16 %v730, %v729
        %v772 = vpack.c.b16 %v732, %v731
        %813 = vmatprep.subr.bf16.mxu0 0
        %814 = vmatpush1.bf16.msra.mxu0 %v733
        %815 = vmatprep.subr.bf16.mxu0 0
        %816 = vmatpush1.bf16.msra.mxu0 %v734
        %817 = vmatprep.subr.bf16.mxu0 0
        %818 = vmatpush1.bf16.msra.mxu0 %v735
        %819 = vmatprep.subr.bf16.mxu0 0
        %820 = vmatpush1.bf16.msra.mxu0 %v736
        %821 = vmatprep.subr.bf16.mxu0 0
        %822 = vmatpush1.bf16.msra.mxu0 %v737
        %823 = vmatprep.subr.bf16.mxu0 0
        %824 = vmatpush1.bf16.msra.mxu0 %v738
        %825 = vmatprep.subr.bf16.mxu0 0
        %826 = vmatpush1.bf16.msra.mxu0 %v739
        %827 = vmatprep.subr.bf16.mxu0 0
        %828 = vmatpush1.bf16.msra.mxu0 %v740
        %829 = vmatprep.subr.bf16.mxu0 0
        %830 = vmatpush1.bf16.msra.mxu0 %v741
        %831 = vmatprep.subr.bf16.mxu0 0
        %832 = vmatpush1.bf16.msra.mxu0 %v742
        %833 = vmatprep.subr.bf16.mxu0 0
        %834 = vmatpush1.bf16.msra.mxu0 %v743
        %835 = vmatprep.subr.bf16.mxu0 0
        %836 = vmatpush1.bf16.msra.mxu0 %v744
        %837 = vmatprep.subr.bf16.mxu0 0
        %838 = vmatpush1.bf16.msra.mxu0 %v745
        %839 = vmatprep.subr.bf16.mxu0 0
        %840 = vmatpush1.bf16.msra.mxu0 %v746
        %841 = vmatprep.subr.bf16.mxu0 0
        %842 = vmatpush1.bf16.msra.mxu0 %v747
        %843 = vmatprep.subr.bf16.mxu0 0
        %844 = vmatpush1.bf16.msra.mxu0 %v748
        %845 = vmatprep.mubr.bf16.mxu0 %v482
        %846 = vmatmul.mubr.bf16.gmra.mrb[0].mxu0 %v481
        %v847 = vpop.f32.mrb[0].mxu0
        %v848 = vadd.f32 %v571, %v847
        %v849 = vpop.f32.mrb[0].mxu0
        %v850 = vpop.f32.mrb[0].mxu0
        %v851 = vadd.f32 %v571, %v850
        %v852 = vpop.f32.mrb[0].mxu0
        %853 = vdwg.mxu0
        %854 = vmatprep.subr.bf16.mxu0 0
        %855 = vmatpush1.bf16.msra.mxu0 %v749
        %856 = vmatprep.subr.bf16.mxu0 0
        %857 = vmatpush1.bf16.msra.mxu0 %v750
        %858 = vmatprep.subr.bf16.mxu0 0
        %859 = vmatpush1.bf16.msra.mxu0 %v751
        %860 = vmatprep.subr.bf16.mxu0 0
        %861 = vmatpush1.bf16.msra.mxu0 %v752
        %862 = vmatprep.subr.bf16.mxu0 0
        %863 = vmatpush1.bf16.msra.mxu0 %v753
        %864 = vmatprep.subr.bf16.mxu0 0
        %865 = vmatpush1.bf16.msra.mxu0 %v754
        %866 = vmatprep.subr.bf16.mxu0 0
        %867 = vmatpush1.bf16.msra.mxu0 %v755
        %868 = vmatprep.subr.bf16.mxu0 0
        %869 = vmatpush1.bf16.msra.mxu0 %v756
        %870 = vmatprep.subr.bf16.mxu0 0
        %871 = vmatpush1.bf16.msra.mxu0 %v757
        %872 = vmatprep.subr.bf16.mxu0 0
        %873 = vmatpush1.bf16.msra.mxu0 %v758
        %874 = vmatprep.subr.bf16.mxu0 0
        %875 = vmatpush1.bf16.msra.mxu0 %v759
        %876 = vmatprep.subr.bf16.mxu0 0
        %877 = vmatpush1.bf16.msra.mxu0 %v760
        %878 = vmatprep.subr.bf16.mxu0 0
        %879 = vmatpush1.bf16.msra.mxu0 %v761
        %880 = vmatprep.subr.bf16.mxu0 0
        %881 = vmatpush1.bf16.msra.mxu0 %v762
        %882 = vmatprep.subr.bf16.mxu0 0
        %883 = vmatpush1.bf16.msra.mxu0 %v763
        %884 = vmatprep.subr.bf16.mxu0 0
        %885 = vmatpush1.bf16.msra.mxu0 %v764
        %886 = vmatprep.mubr.bf16.mxu0 %v484
        %887 = vmatmul.mubr.bf16.gmra.mrb[0].mxu0 %v483
        %v888 = vpop.f32.mrb[0].mxu0
        %v889 = vadd.f32 %v848, %v888
        %v890 = vpop.f32.mrb[0].mxu0
        %v891 = vpop.f32.mrb[0].mxu0
        %v892 = vadd.f32 %v851, %v891
        %v893 = vpop.f32.mrb[0].mxu0
        %894 = vdwg.mxu0
        %895 = vmatprep.subr.bf16.mxu0 0
        %896 = vmatpush1.bf16.msra.mxu0 %v765
        %897 = vmatprep.subr.bf16.mxu0 0
        %898 = vmatpush1.bf16.msra.mxu0 %v766
        %899 = vmatprep.subr.bf16.mxu0 0
        %900 = vmatpush1.bf16.msra.mxu0 %v767
        %901 = vmatprep.subr.bf16.mxu0 0
        %902 = vmatpush1.bf16.msra.mxu0 %v768
        %903 = vmatprep.subr.bf16.mxu0 0
        %904 = vmatpush1.bf16.msra.mxu0 %v769
        %905 = vmatprep.subr.bf16.mxu0 0
        %906 = vmatpush1.bf16.msra.mxu0 %v770
        %907 = vmatprep.subr.bf16.mxu0 0
        %908 = vmatpush1.bf16.msra.mxu0 %v771
        %909 = vmatprep.subr.bf16.mxu0 0
        %910 = vmatpush1.bf16.msra.mxu0 %v772
        %911 = vmatprep.subr.bf16.mxu0 0
        %912 = vmatpush1.bf16.msra.mxu0 0
        %913 = vmatprep.subr.bf16.mxu0 0
        %914 = vmatpush1.bf16.msra.mxu0 0
        %915 = vmatprep.subr.bf16.mxu0 0
        %916 = vmatpush1.bf16.msra.mxu0 0
        %917 = vmatprep.subr.bf16.mxu0 0
        %918 = vmatpush1.bf16.msra.mxu0 0
        %919 = vmatprep.subr.bf16.mxu0 0
        %920 = vmatpush1.bf16.msra.mxu0 0
        %921 = vmatprep.subr.bf16.mxu0 0
        %922 = vmatpush1.bf16.msra.mxu0 0
        %923 = vmatprep.subr.bf16.mxu0 0
        %924 = vmatpush1.bf16.msra.mxu0 0
        %925 = vmatprep.subr.bf16.mxu0 0
        %926 = vmatpush1.bf16.msra.mxu0 0
        %927 = vmatprep.mubr.bf16.mxu0 0
        %928 = vmatmul.mubr.bf16.gmra.mrb[0].mxu0 %v485
        %v929 = vpop.f32.mrb[0].mxu0
        %v930 = vadd.f32 %v889, %v929
        %v931 = vpop.f32.mrb[0].mxu0
        %v932 = vpop.f32.mrb[0].mxu0
        %v933 = vadd.f32 %v892, %v932
        %v934 = vpop.f32.mrb[0].mxu0
        %935 = vdwg.mxu0
        %v936 = vmax.f32 %v930, 0.0
        %v937 = vmax.f32 %v933, 0.0
        %v938 = vpack.c.bf16 %v937, %v936
        %v939 = vld [vmem:[#allocation5] sm:$0xf]
        %v940 = vld [vmem:[#allocation5 + $0x4] sm:$0xf]
        %v941 = vld [vmem:[#allocation5 + $0x8] sm:$0xf]
        %v942 = vld [vmem:[#allocation5 + $0xc] sm:$0xf]
        %v943 = vld [vmem:[#allocation5 + $0x10] sm:$0xf]
        %v944 = vld [vmem:[#allocation5 + $0x14] sm:$0xf]
        %v945 = vld [vmem:[#allocation5 + $0x18] sm:$0xf]
        %v946 = vld [vmem:[#allocation5 + $0x1c] sm:$0xf]
        %v947 = vld [vmem:[#allocation5 + $0x20] sm:$0xf]
        %v948 = vld [vmem:[#allocation5 + $0x24] sm:$0xf]
        %v949 = vld [vmem:[#allocation5 + $0x28] sm:$0xf]
        %v950 = vld [vmem:[#allocation5 + $0x2c] sm:$0xf]
        %v951 = vld [vmem:[#allocation5 + $0x30] sm:$0xf]
        %v952 = vld [vmem:[#allocation5 + $0x34] sm:$0xf]
        %v953 = vld [vmem:[#allocation5 + $0x38] sm:$0xf]
        %v954 = vld [vmem:[#allocation5 + $0x3c] sm:$0xf]
        %v955 = vld [vmem:[%s4] sm:$0x1]
        %v957 = vlaneseq
        %v958 = vshrl.u32 %v957, 7
        %v959 = vsub.s32 0, %v958
        %v960 = vrot.slane %v955, %v959
        %v978 = vunpack.c.l.b16 %v939
        %v979 = vunpack.c.l.b16 %v940
        %v980 = vunpack.c.l.b16 %v941
        %v981 = vunpack.c.l.b16 %v942
        %v982 = vunpack.c.l.b16 %v943
        %v983 = vunpack.c.l.b16 %v944
        %v984 = vunpack.c.l.b16 %v945
        %v985 = vunpack.c.l.b16 %v946
        %v986 = vunpack.c.l.b16 %v947
        %v987 = vunpack.c.l.b16 %v948
        %v988 = vunpack.c.l.b16 %v949
        %v989 = vunpack.c.l.b16 %v950
        %v990 = vunpack.c.l.b16 %v951
        %v991 = vunpack.c.l.b16 %v952
        %v992 = vunpack.c.l.b16 %v953
        %v993 = vunpack.c.l.b16 %v954
        %v994 = vpack.c.b16 %v979, %v978
        %v995 = vpack.c.b16 %v981, %v980
        %v996 = vpack.c.b16 %v983, %v982
        %v997 = vpack.c.b16 %v985, %v984
        %v998 = vpack.c.b16 %v987, %v986
        %v999 = vpack.c.b16 %v989, %v988
        %v1000 = vpack.c.b16 %v991, %v990
        %v1001 = vpack.c.b16 %v993, %v992
        %1010 = vmatprep.subr.bf16.mxu0 0
        %1011 = vmatpush1.bf16.msra.mxu0 %v994
        %1012 = vmatprep.subr.bf16.mxu0 0
        %1013 = vmatpush1.bf16.msra.mxu0 %v995
        %1014 = vmatprep.subr.bf16.mxu0 0
        %1015 = vmatpush1.bf16.msra.mxu0 %v996
        %1016 = vmatprep.subr.bf16.mxu0 0
        %1017 = vmatpush1.bf16.msra.mxu0 %v997
        %1018 = vmatprep.subr.bf16.mxu0 0
        %1019 = vmatpush1.bf16.msra.mxu0 %v998
        %1020 = vmatprep.subr.bf16.mxu0 0
        %1021 = vmatpush1.bf16.msra.mxu0 %v999
        %1022 = vmatprep.subr.bf16.mxu0 0
        %1023 = vmatpush1.bf16.msra.mxu0 %v1000
        %1024 = vmatprep.subr.bf16.mxu0 0
        %1025 = vmatpush1.bf16.msra.mxu0 %v1001
        %1026 = vmatprep.subr.bf16.mxu0 0
        %1027 = vmatpush1.bf16.msra.mxu0 0
        %1028 = vmatprep.subr.bf16.mxu0 0
        %1029 = vmatpush1.bf16.msra.mxu0 0
        %1030 = vmatprep.subr.bf16.mxu0 0
        %1031 = vmatpush1.bf16.msra.mxu0 0
        %1032 = vmatprep.subr.bf16.mxu0 0
        %1033 = vmatpush1.bf16.msra.mxu0 0
        %1034 = vmatprep.subr.bf16.mxu0 0
        %1035 = vmatpush1.bf16.msra.mxu0 0
        %1036 = vmatprep.subr.bf16.mxu0 0
        %1037 = vmatpush1.bf16.msra.mxu0 0
        %1038 = vmatprep.subr.bf16.mxu0 0
        %1039 = vmatpush1.bf16.msra.mxu0 0
        %1040 = vmatprep.subr.bf16.mxu0 0
        %1041 = vmatpush1.bf16.msra.mxu0 0
        %1042 = vmatprep.mubr.bf16.mxu0 0
        %1043 = vmatmul.mubr.bf16.gmra.mrb[0].mxu0 %v938
        %v1044 = vpop.f32.mrb[0].mxu0
        %v1045 = vadd.f32 %v960, %v1044
        %v1046 = vpop.f32.mrb[0].mxu0
        %v1047 = vpop.f32.mrb[0].mxu0
        %v1048 = vadd.f32 %v960, %v1047
        %v1049 = vpop.f32.mrb[0].mxu0
        %1050 = vdwg.mxu0
        %v1051 = vmax.f32 %v1045, 0.0
        %v1052 = vmax.f32 %v1048, 0.0
        %v1053 = vpack.c.bf16 %v1052, %v1051
        %v1054 = vld [vmem:[#allocation7] sm:$0xf]
        %v1055 = vld [vmem:[#allocation7 + $0x4] sm:$0xf]
        %v1056 = vld [vmem:[#allocation7 + $0x8] sm:$0xf]
        %v1057 = vld [vmem:[#allocation7 + $0xc] sm:$0xf]
        %v1058 = vld [vmem:[#allocation7 + $0x10] sm:$0xf]
        %v1059 = vld [vmem:[#allocation7 + $0x14] sm:$0xf]
        %v1060 = vld [vmem:[#allocation7 + $0x18] sm:$0xf]
        %v1061 = vld [vmem:[#allocation7 + $0x1c] sm:$0xf]
        %v1062 = vld [vmem:[#allocation7 + $0x20] sm:$0xf]
        %v1063 = vld [vmem:[#allocation7 + $0x24] sm:$0xf]
        %v1064 = vld [vmem:[#allocation7 + $0x28] sm:$0xf]
        %v1065 = vld [vmem:[#allocation7 + $0x2c] sm:$0xf]
        %v1066 = vld [vmem:[#allocation7 + $0x30] sm:$0xf]
        %v1067 = vld [vmem:[#allocation7 + $0x34] sm:$0xf]
        %v1068 = vld [vmem:[#allocation7 + $0x38] sm:$0xf]
        %v1069 = vld [vmem:[#allocation7 + $0x3c] sm:$0xf]
        %v1070 = vld [vmem:[%s6] sm:$0x1]
        %v1072 = vlaneseq
        %v1073 = vshrl.u32 %v1072, 7
        %v1074 = vsub.s32 0, %v1073
        %v1075 = vrot.slane %v1070, %v1074
        %v1093 = vunpack.c.l.b16 %v1054
        %v1094 = vunpack.c.l.b16 %v1055
        %v1095 = vunpack.c.l.b16 %v1056
        %v1096 = vunpack.c.l.b16 %v1057
        %v1097 = vunpack.c.l.b16 %v1058
        %v1098 = vunpack.c.l.b16 %v1059
        %v1099 = vunpack.c.l.b16 %v1060
        %v1100 = vunpack.c.l.b16 %v1061
        %v1101 = vunpack.c.l.b16 %v1062
        %v1102 = vunpack.c.l.b16 %v1063
        %v1103 = vunpack.c.l.b16 %v1064
        %v1104 = vunpack.c.l.b16 %v1065
        %v1105 = vunpack.c.l.b16 %v1066
        %v1106 = vunpack.c.l.b16 %v1067
        %v1107 = vunpack.c.l.b16 %v1068
        %v1108 = vunpack.c.l.b16 %v1069
        %v1109 = vpack.c.b16 %v1094, %v1093
        %v1110 = vpack.c.b16 %v1096, %v1095
        %v1111 = vpack.c.b16 %v1098, %v1097
        %v1112 = vpack.c.b16 %v1100, %v1099
        %v1113 = vpack.c.b16 %v1102, %v1101
        %v1114 = vpack.c.b16 %v1104, %v1103
        %v1115 = vpack.c.b16 %v1106, %v1105
        %v1116 = vpack.c.b16 %v1108, %v1107
        %1125 = vmatprep.subr.bf16.mxu0 0
        %1126 = vmatpush1.bf16.msra.mxu0 %v1109
        %1127 = vmatprep.subr.bf16.mxu0 0
        %1128 = vmatpush1.bf16.msra.mxu0 %v1110
        %1129 = vmatprep.subr.bf16.mxu0 0
        %1130 = vmatpush1.bf16.msra.mxu0 %v1111
        %1131 = vmatprep.subr.bf16.mxu0 0
        %1132 = vmatpush1.bf16.msra.mxu0 %v1112
        %1133 = vmatprep.subr.bf16.mxu0 0
        %1134 = vmatpush1.bf16.msra.mxu0 %v1113
        %1135 = vmatprep.subr.bf16.mxu0 0
        %1136 = vmatpush1.bf16.msra.mxu0 %v1114
        %1137 = vmatprep.subr.bf16.mxu0 0
        %1138 = vmatpush1.bf16.msra.mxu0 %v1115
        %1139 = vmatprep.subr.bf16.mxu0 0
        %1140 = vmatpush1.bf16.msra.mxu0 %v1116
        %1141 = vmatprep.subr.bf16.mxu0 0
        %1142 = vmatpush1.bf16.msra.mxu0 0
        %1143 = vmatprep.subr.bf16.mxu0 0
        %1144 = vmatpush1.bf16.msra.mxu0 0
        %1145 = vmatprep.subr.bf16.mxu0 0
        %1146 = vmatpush1.bf16.msra.mxu0 0
        %1147 = vmatprep.subr.bf16.mxu0 0
        %1148 = vmatpush1.bf16.msra.mxu0 0
        %1149 = vmatprep.subr.bf16.mxu0 0
        %1150 = vmatpush1.bf16.msra.mxu0 0
        %1151 = vmatprep.subr.bf16.mxu0 0
        %1152 = vmatpush1.bf16.msra.mxu0 0
        %1153 = vmatprep.subr.bf16.mxu0 0
        %1154 = vmatpush1.bf16.msra.mxu0 0
        %1155 = vmatprep.subr.bf16.mxu0 0
        %1156 = vmatpush1.bf16.msra.mxu0 0
        %1157 = vmatprep.mubr.bf16.mxu0 0
        %1158 = vmatmul.mubr.bf16.gmra.mrb[0].mxu0 %v1053
        %v1159 = vpop.f32.mrb[0].mxu0
        %v1160 = vadd.f32 %v1075, %v1159
        %v1161 = vpop.f32.mrb[0].mxu0
        %v1162 = vpop.f32.mrb[0].mxu0
        %v1163 = vadd.f32 %v1075, %v1162
        %v1164 = vpop.f32.mrb[0].mxu0
        %1165 = vdwg.mxu0
        %1166 = vmax.xlane.f32.xlu0 %v1160
        %v1167 = vpop.xlane.xlu0 %1166
        %1168 = vmax.xlane.f32.xlu0 %v1163
        %v1169 = vpop.xlane.xlu0 %1168
        %v1170 = vsub.f32 %v1160, %v1167
        %v1171 = vsub.f32 %v1163, %v1169
        %v1172 = vmul.f32 %v1170, 1.442695
        %v1173 = vpow.pop %v1172
        %v1174 = vmul.f32 %v1171, 1.442695
        %v1175 = vpow.pop %v1174
        %1176 = vadd.xlane.f32.xlu0 %v1173
        %v1177 = vpop.xlane.xlu0 %1176
        %1178 = vadd.xlane.f32.xlu0 %v1175
        %v1179 = vpop.xlane.xlu0 %1178
        %v1180 = vlog2.pop %v1177
        %v1181 = vmul.f32 %v1180, 0.6931472
        %v1182 = vlog2.pop %v1179
        %v1183 = vmul.f32 %v1182, 0.6931472
        %v1184 = vadd.f32 %v1167, %v1181
        %v1185 = vadd.f32 %v1169, %v1183
        %v1186 = vsub.f32 %v1160, %v1184
        %v1187 = vsub.f32 %v1163, %v1185
        %1188 = vst [vmem:[%s316] sm:$0xff] %v1186
        %1189 = vst [vmem:[%s316 + $0x8] sm:$0xff] %v1187
        %s1190 = sand.u32 %s183, 1
        %s1191 = scalar_lea.sflag [#allocation4], %s1190
        %s1192 = sand.u32 %s183, 1
        %s1193 = smul.addr %s1192, 16
        %s1194 = scalar_lea.vmem [#allocation8], %s1193
        // Predicated region
        $region61: #{tpu_custom_call.1} parent=47 // pred_check
          %p1195 = pneg %p193
        $region62: #{tpu_custom_call.1} parent=47 // pred_check_branch
          %1197 = sbr.rel (%p1195) target = $region64
        $region63: #{tpu_custom_call.1} parent=47 // pred_region
          %s1198 = smul.u32 2, %s23
          %s1200 = ssub.s32 256, 256
          %1201 = vsyncadd %s1191, %s1200
          %s1202 = smul.addr %s1198, 128
          %s1203 = scalar_lea.hbm %s7, %s1202
          %s1204 = sshll.u32 %s1194, 4
          %s1205 = int_to_ptr.vmem [resolvable:$true] %s1204
          %1210 = dma.vmem_to_hbm [thread:$0]  %s1205, 256, %s1203, %s1191, 128, 128, 8
        $region64: #{tpu_custom_call.1} parent=47 // pred_fallthru
          _
      $region48: #{tpu_custom_call.1} parent=5 // pred_fallthru
        _
      %p1211 = scmp.le.s32.totalorder 2, %s18
      // Predicated region
      $region65: #{tpu_custom_call.1} parent=5 // pred_check
        %p1212 = pneg %p1211
      $region66: #{tpu_custom_call.1} parent=5 // pred_check_branch
        %1214 = sbr.rel (%p1212) target = $region68
      $region67: #{tpu_custom_call.1} parent=5 // pred_region
        %s1215 = ssub.s32 %s18, 2
        // Predicated region
        $region69: #{tpu_custom_call.1} parent=67 // pred_check
          %p1216 = pneg %p199
        $region70: #{tpu_custom_call.1} parent=67 // pred_check_branch
          %1218 = sbr.rel (%p1216) target = $region72
        $region71: #{tpu_custom_call.1} parent=67 // pred_region
          %s1219 = sand.u32 %s184, 1
          %s1220 = scalar_lea.sflag [#allocation4], %s1219
          %s1221 = sand.u32 %s184, 1
          %s1222 = smul.addr %s1221, 16
          %s1223 = scalar_lea.vmem [#allocation8], %s1222
          %1224 = dma.done %s1220, 256
        $region72: #{tpu_custom_call.1} parent=67 // pred_fallthru
          _
      $region68: #{tpu_custom_call.1} parent=5 // pred_fallthru
        _
    $region6: #{tpu_custom_call.1} parent=1 // loop_footer
      %s22 = sadd.s32 1, %s18
    $region7: #{tpu_custom_call.1} parent=1 // loop_footer_branch
      %17 = sbr.rel target = $region3
    $region8: #{tpu_custom_call.1} parent=1 // loop_exit
      _
    %1225 = vsyncpa [#allocation3], 1
    %s1226 = scalar_lea.sflag [#allocation3], 1
    %1227 = vsyncpa %s1226, 1
    %1228 = vsyncpa [#allocation6], 1
    %1229 = vsyncpa [#allocation4], 1
    %s1230 = scalar_lea.sflag [#allocation4], 1
    %1231 = vsyncpa %s1230, 1

// kernel: tpu_custom_call.1
$region0: #{tpu_custom_call.1}
  #allocation0 [shape = 'u32[]', space=smem, size = 0x4, offset = 0x4, fixed_abs, tag = 'smem constant byte address 0x4 - core index']
  #allocation1 [shape = 'u32[144,128]{1,0:T(1,128)}', space=vmem, size = 0x12000, scoped, tag = 'internal scratch']
  %s0 = inlined_call_operand.vmem [shape: s32[32,5], index: 0, kind: input, shape index: {}]
  %s1 = inlined_call_operand.hbm [shape: bf16[640,128], index: 1, kind: input, shape index: {}]
  %s2 = inlined_call_operand.vmem [shape: f32[1,128], index: 2, kind: input, shape index: {}]
  %s3 = inlined_call_operand.hbm [shape: bf16[128,128], index: 3, kind: input, shape index: {}]
  %s4 = inlined_call_operand.vmem [shape: f32[1,128], index: 4, kind: input, shape index: {}]
  %s5 = inlined_call_operand.hbm [shape: bf16[128,128], index: 5, kind: input, shape index: {}]
  %s6 = inlined_call_operand.vmem [shape: f32[1,128], index: 6, kind: input, shape index: {}]
  %s7 = inlined_call_operand.hbm [shape: f32[32,128], index: 7, kind: output, shape index: {}]
  %s8 = sld [smem:[#allocation0]]
  $region73: #{tpu_custom_call.1} parent=0
    _
  %s10 = ssub.s32 1, %s8
  %s11 = scalar_select 0, %s10, %s8
  $region1: #{tpu_custom_call.1} parent=0
    #allocation2 [shape = 'u8[163840]{0}', space=vmem, size = 0x28000, scoped, tag = 'input window, operand 1, single buffered']
    #allocation3 [shape = 's32[2]{0}', space=sflag, size = 0x8, scoped, tag = 'scoped memory for tpu_custom_call.1']
    #allocation4 [shape = 's32[2]{0}', space=sflag, size = 0x8, scoped, tag = 'scoped memory for tpu_custom_call.1']
    #allocation5 [shape = 'u8[32768]{0}', space=vmem, size = 0x8000, scoped, tag = 'input window, operand 3, single buffered']
    #allocation6 [shape = 's32[1]{0}', space=sflag, size = 0x4, scoped, tag = 'scoped memory for tpu_custom_call.1']
    #allocation7 [shape = 'u8[32768]{0}', space=vmem, size = 0x8000, scoped, tag = 'input window, operand 5, single buffered']
    #allocation8 [shape = 'u8[16384]{0}', space=vmem, size = 0x4000, scoped, tag = 'output window, operand 0']
    %12 = vsyncpa [#allocation3], 0
    %13 = vsyncpa [#allocation6], 0
    %14 = vsyncpa [#allocation4], 0
    %s15 = scalar_lea.sflag [#allocation4], 1
    %16 = vsyncpa %s15, 0
    loop: start=0, step=1, limit=4
    $region2: #{tpu_custom_call.1} parent=1 // loop_pre_header
      _
    $region3: #{tpu_custom_call.1} parent=1 // loop_header
      %s18 = sphi 0, %s22
      %p19 = scmp.ge.s32.totalorder %s18, 4
      %s28 = sphi 0, %s30
      %s31 = sphi 0, %s28
      %s32 = sphi 0, %s31
      %s48 = sphi 0, %s32
      %s52 = sphi 0, %s52
      %s54 = sphi 0, %s52
      %s55 = sphi 0, %s54
      %s69 = sphi 0, %s55
      %s73 = sphi 0, %s73
      %s75 = sphi 0, %s73
      %s76 = sphi 0, %s75
      %s90 = sphi 0, %s76
      %s94 = sphi 0, %s94
      %s96 = sphi 0, %s94
      %s97 = sphi 0, %s96
      %s111 = sphi 0, %s97
      %s115 = sphi 0, %s115
      %s117 = sphi 0, %s115
      %s118 = sphi 0, %s117
      %s132 = sphi 0, %s118
      %s136 = sphi 0, %s136
      %s138 = sphi 0, %s136
      %s139 = sphi 0, %s138
      %s153 = sphi 0, %s139
      %s157 = sphi 0, %s157
      %s159 = sphi 0, %s157
      %s160 = sphi 0, %s159
      %s174 = sphi 0, %s160
      %s180 = sphi 0, %s182
      %s183 = sphi 0, %s180
      %s184 = sphi 0, %s183
      %s200 = sphi 0, %s184
    $region4: #{tpu_custom_call.1} parent=1 // loop_header_branch
      %21 = sbr.rel (%p19) target = $region8
    $region5: #{tpu_custom_call.1} parent=1 // loop_body
      %s23 = ssub.s32 %s18, 1
      %s24 = ssub.s32 %s18, 2
      %s25 = sadd.s32 %s18, 1
      %s26 = ssub.s32 %s18, %s25
      %p27 = scmp.eq.s32.totalorder %s26, 0
      %s29 = sadd.s32 %s28, 1
      %s30 = scalar_select %p27, %s28, %s29
      %p33 = pneg %p27
      %p34 = scmp.eq.s32.totalorder %s18, 1
      %p35 = por %p33, %p34
      %p36 = scmp.ne.s32.totalorder %s28, %s31
      %p37 = scmp.eq.s32.totalorder %s18, 0
      %p38 = por %p36, %p37
      %p39 = scmp.ne.s32.totalorder %s28, %s31
      %p40 = scmp.eq.s32.totalorder %s23, 1
      %p41 = por %p39, %p40
      %p42 = scmp.ne.s32.totalorder %s31, %s32
      %p43 = scmp.eq.s32.totalorder %s23, 0
      %p44 = por %p42, %p43
      %p45 = scmp.ne.s32.totalorder %s31, %s32
      %p46 = scmp.eq.s32.totalorder %s24, 1
      %p47 = por %p45, %p46
      %p49 = scmp.ne.s32.totalorder %s32, %s48
      %p50 = scmp.eq.s32.totalorder %s24, 0
      %p51 = por %p49, %p50
      %s53 = sadd.s32 %s52, 1
      %p56 = scmp.eq.s32.totalorder %s18, 1
      %p57 = scmp.ne.s32.totalorder %s52, %s54
      %p58 = scmp.eq.s32.totalorder %s18, 0
      %p59 = por %p57, %p58
      %p60 = scmp.ne.s32.totalorder %s52, %s54
      %p61 = scmp.eq.s32.totalorder %s23, 1
      %p62 = por %p60, %p61
      %p63 = scmp.ne.s32.totalorder %s54, %s55
      %p64 = scmp.eq.s32.totalorder %s23, 0
      %p65 = por %p63, %p64
      %p66 = scmp.ne.s32.totalorder %s54, %s55
      %p67 = scmp.eq.s32.totalorder %s24, 1
      %p68 = por %p66, %p67
      %p70 = scmp.ne.s32.totalorder %s55, %s69
      %p71 = scmp.eq.s32.totalorder %s24, 0
      %p72 = por %p70, %p71
      %s74 = sadd.s32 %s73, 1
      %p77 = scmp.eq.s32.totalorder %s18, 1
      %p78 = scmp.ne.s32.totalorder %s73, %s75
      %p79 = scmp.eq.s32.totalorder %s18, 0
      %p80 = por %p78, %p79
      %p81 = scmp.ne.s32.totalorder %s73, %s75
      %p82 = scmp.eq.s32.totalorder %s23, 1
      %p83 = por %p81, %p82
      %p84 = scmp.ne.s32.totalorder %s75, %s76
      %p85 = scmp.eq.s32.totalorder %s23, 0
      %p86 = por %p84, %p85
      %p87 = scmp.ne.s32.totalorder %s75, %s76
      %p88 = scmp.eq.s32.totalorder %s24, 1
      %p89 = por %p87, %p88
      %p91 = scmp.ne.s32.totalorder %s76, %s90
      %p92 = scmp.eq.s32.totalorder %s24, 0
      %p93 = por %p91, %p92
      %s95 = sadd.s32 %s94, 1
      %p98 = scmp.eq.s32.totalorder %s18, 1
      %p99 = scmp.ne.s32.totalorder %s94, %s96
      %p100 = scmp.eq.s32.totalorder %s18, 0
      %p101 = por %p99, %p100
      %p102 = scmp.ne.s32.totalorder %s94, %s96
      %p103 = scmp.eq.s32.totalorder %s23, 1
      %p104 = por %p102, %p103
      %p105 = scmp.ne.s32.totalorder %s96, %s97
      %p106 = scmp.eq.s32.totalorder %s23, 0
      %p107 = por %p105, %p106
      %p108 = scmp.ne.s32.totalorder %s96, %s97
      %p109 = scmp.eq.s32.totalorder %s24, 1
      %p110 = por %p108, %p109
      %p112 = scmp.ne.s32.totalorder %s97, %s111
      %p113 = scmp.eq.s32.totalorder %s24, 0
      %p114 = por %p112, %p113
      %s116 = sadd.s32 %s115, 1
      %p119 = scmp.eq.s32.totalorder %s18, 1
      %p120 = scmp.ne.s32.totalorder %s115, %s117
      %p121 = scmp.eq.s32.totalorder %s18, 0
      %p122 = por %p120, %p121
      %p123 = scmp.ne.s32.totalorder %s115, %s117
      %p124 = scmp.eq.s32.totalorder %s23, 1
      %p125 = por %p123, %p124
      %p126 = scmp.ne.s32.totalorder %s117, %s118
      %p127 = scmp.eq.s32.totalorder %s23, 0
      %p128 = por %p126, %p127
      %p129 = scmp.ne.s32.totalorder %s117, %s118
      %p130 = scmp.eq.s32.totalorder %s24, 1
      %p131 = por %p129, %p130
      %p133 = scmp.ne.s32.totalorder %s118, %s132
      %p134 = scmp.eq.s32.totalorder %s24, 0
      %p135 = por %p133, %p134
      %s137 = sadd.s32 %s136, 1
      %p140 = scmp.eq.s32.totalorder %s18, 1
      %p141 = scmp.ne.s32.totalorder %s136, %s138
      %p142 = scmp.eq.s32.totalorder %s18, 0
      %p143 = por %p141, %p142
      %p144 = scmp.ne.s32.totalorder %s136, %s138
      %p145 = scmp.eq.s32.totalorder %s23, 1
      %p146 = por %p144, %p145
      %p147 = scmp.ne.s32.totalorder %s138, %s139
      %p148 = scmp.eq.s32.totalorder %s23, 0
      %p149 = por %p147, %p148
      %p150 = scmp.ne.s32.totalorder %s138, %s139
      %p151 = scmp.eq.s32.totalorder %s24, 1
      %p152 = por %p150, %p151
      %p154 = scmp.ne.s32.totalorder %s139, %s153
      %p155 = scmp.eq.s32.totalorder %s24, 0
      %p156 = por %p154, %p155
      %s158 = sadd.s32 %s157, 1
      %p161 = scmp.eq.s32.totalorder %s18, 1
      %p162 = scmp.ne.s32.totalorder %s157, %s159
      %p163 = scmp.eq.s32.totalorder %s18, 0
      %p164 = por %p162, %p163
      %p165 = scmp.ne.s32.totalorder %s157, %s159
      %p166 = scmp.eq.s32.totalorder %s23, 1
      %p167 = por %p165, %p166
      %p168 = scmp.ne.s32.totalorder %s159, %s160
      %p169 = scmp.eq.s32.totalorder %s23, 0
      %p170 = por %p168, %p169
      %p171 = scmp.ne.s32.totalorder %s159, %s160
      %p172 = scmp.eq.s32.totalorder %s24, 1
      %p173 = por %p171, %p172
      %p175 = scmp.ne.s32.totalorder %s160, %s174
      %p176 = scmp.eq.s32.totalorder %s24, 0
      %p177 = por %p175, %p176
      %s178 = ssub.s32 %s18, %s25
      %p179 = scmp.eq.s32.totalorder %s178, 0
      %s181 = sadd.s32 %s180, 1
      %s182 = scalar_select %p179, %s180, %s181
      %p185 = pneg %p179
      %p186 = scmp.eq.s32.totalorder %s18, 1
      %p187 = por %p185, %p186
      %p188 = scmp.ne.s32.totalorder %s180, %s183
      %p189 = scmp.eq.s32.totalorder %s18, 0
      %p190 = por %p188, %p189
      %p191 = scmp.ne.s32.totalorder %s180, %s183
      %p192 = scmp.eq.s32.totalorder %s23, 1
      %p193 = por %p191, %p192
      %p194 = scmp.ne.s32.totalorder %s183, %s184
      %p195 = scmp.eq.s32.totalorder %s23, 0
      %p196 = por %p194, %p195
      %p197 = scmp.ne.s32.totalorder %s183, %s184
      %p198 = scmp.eq.s32.totalorder %s24, 1
      %p199 = por %p197, %p198
      %p201 = scmp.ne.s32.totalorder %s184, %s200
      %p202 = scmp.eq.s32.totalorder %s24, 0
      %p203 = por %p201, %p202
      %p204 = scmp.le.s32.totalorder 1, %s18
      %p205 = scmp.lt.s32.totalorder %s18, 3
      %p206 = pnand %p204, %p205
      %p207 = pneg %p206
      // Predicated region
      $region9: #{tpu_custom_call.1} parent=5 // pred_check
        _
      $region10: #{tpu_custom_call.1} parent=5 // pred_check_branch
        %209 = sbr.rel (%p206) target = $region12
      $region11: #{tpu_custom_call.1} parent=5 // pred_region
        %s210 = ssub.s32 %s18, 1
        // Predicated region
        $region13: #{tpu_custom_call.1} parent=11 // pred_check
          %p211 = pneg %p65
        $region14: #{tpu_custom_call.1} parent=11 // pred_check_branch
          %213 = sbr.rel (%p211) target = $region16
        $region15: #{tpu_custom_call.1} parent=11 // pred_region
          %s215 = ssub.s32 5120, 5120
          %216 = vsyncadd [#allocation3], %s215
          %s217 = sshll.u32 [#allocation2], 4
          %s218 = int_to_ptr.vmem [resolvable:$true] %s217
          %223 = dma.hbm_to_vmem [thread:$0]  %s1, 5120, %s218, [#allocation3], 64, 64, 4
        $region16: #{tpu_custom_call.1} parent=11 // pred_fallthru
          _
        // Predicated region
        $region17: #{tpu_custom_call.1} parent=11 // pred_check
          %p224 = pneg %p86
        $region18: #{tpu_custom_call.1} parent=11 // pred_check_branch
          %226 = sbr.rel (%p224) target = $region20
        $region19: #{tpu_custom_call.1} parent=11 // pred_region
          _
        $region20: #{tpu_custom_call.1} parent=11 // pred_fallthru
          _
        // Predicated region
        $region21: #{tpu_custom_call.1} parent=11 // pred_check
          %p227 = pneg %p107
        $region22: #{tpu_custom_call.1} parent=11 // pred_check_branch
          %229 = sbr.rel (%p227) target = $region24
        $region23: #{tpu_custom_call.1} parent=11 // pred_region
          %s231 = ssub.s32 1024, 1024
          %232 = vsyncadd [#allocation6], %s231
          %s233 = sshll.u32 [#allocation5], 4
          %s234 = int_to_ptr.vmem [resolvable:$true] %s233
          %239 = dma.hbm_to_vmem [thread:$0]  %s3, 1024, %s234, [#allocation6], 64, 64, 4
        $region24: #{tpu_custom_call.1} parent=11 // pred_fallthru
          _
        // Predicated region
        $region25: #{tpu_custom_call.1} parent=11 // pred_check
          %p240 = pneg %p128
        $region26: #{tpu_custom_call.1} parent=11 // pred_check_branch
          %242 = sbr.rel (%p240) target = $region28
        $region27: #{tpu_custom_call.1} parent=11 // pred_region
          _
        $region28: #{tpu_custom_call.1} parent=11 // pred_fallthru
          _
        // Predicated region
        $region29: #{tpu_custom_call.1} parent=11 // pred_check
          %p243 = pneg %p149
        $region30: #{tpu_custom_call.1} parent=11 // pred_check_branch
          %245 = sbr.rel (%p243) target = $region32
        $region31: #{tpu_custom_call.1} parent=11 // pred_region
          %s247 = ssub.s32 1024, 1024
          %248 = vsyncadd [#allocation6], %s247
          %s249 = sshll.u32 [#allocation7], 4
          %s250 = int_to_ptr.vmem [resolvable:$true] %s249
          %255 = dma.hbm_to_vmem [thread:$0]  %s5, 1024, %s250, [#allocation6], 64, 64, 4
        $region32: #{tpu_custom_call.1} parent=11 // pred_fallthru
          _
        // Predicated region
        $region33: #{tpu_custom_call.1} parent=11 // pred_check
          %p256 = pneg %p170
        $region34: #{tpu_custom_call.1} parent=11 // pred_check_branch
          %258 = sbr.rel (%p256) target = $region36
        $region35: #{tpu_custom_call.1} parent=11 // pred_region
          _
        $region36: #{tpu_custom_call.1} parent=11 // pred_fallthru
          _
      $region12: #{tpu_custom_call.1} parent=5 // pred_fallthru
        _
      %p259 = scmp.lt.s32.totalorder %s18, 2
      // Predicated region
      $region37: #{tpu_custom_call.1} parent=5 // pred_check
        %p260 = pneg %p259
      $region38: #{tpu_custom_call.1} parent=5 // pred_check_branch
        %262 = sbr.rel (%p260) target = $region40
      $region39: #{tpu_custom_call.1} parent=5 // pred_region
        // Predicated region
        $region41: #{tpu_custom_call.1} parent=39 // pred_check
          %p263 = pneg %p38
        $region42: #{tpu_custom_call.1} parent=39 // pred_check_branch
          %265 = sbr.rel (%p263) target = $region44
        $region43: #{tpu_custom_call.1} parent=39 // pred_region
          %s266 = smul.u32 2, %s18
          %p267 = scmp.lt.s32.totalorder %s266, 3
          %s268 = scalar_select %p267, %s266, 3
          %s269 = smul.addr %s268, 8
          %s270 = scalar_lea.vmem %s0, %s269
          %s271 = smul.u32 2, %s18
        $region44: #{tpu_custom_call.1} parent=39 // pred_fallthru
          _
      $region40: #{tpu_custom_call.1} parent=5 // pred_fallthru
        _
      %p272 = scmp.le.s32.totalorder 1, %s18
      %p273 = scmp.lt.s32.totalorder %s18, 3
      %p274 = pnand %p272, %p273
      %p275 = pneg %p274
      // Predicated region
      $region45: #{tpu_custom_call.1} parent=5 // pred_check
        _
      $region46: #{tpu_custom_call.1} parent=5 // pred_check_branch
        %277 = sbr.rel (%p274) target = $region48
      $region47: #{tpu_custom_call.1} parent=5 // pred_region
        %s278 = ssub.s32 %s18, 1
        // Predicated region
        $region49: #{tpu_custom_call.1} parent=47 // pred_check
          %p279 = pneg %p65
        $region50: #{tpu_custom_call.1} parent=47 // pred_check_branch
          %281 = sbr.rel (%p279) target = $region52
        $region51: #{tpu_custom_call.1} parent=47 // pred_region
          %282 = dma.done [#allocation3], 5120
        $region52: #{tpu_custom_call.1} parent=47 // pred_fallthru
          _
        // Predicated region
        $region53: #{tpu_custom_call.1} parent=47 // pred_check
          %p283 = pneg %p107
        $region54: #{tpu_custom_call.1} parent=47 // pred_check_branch
          %285 = sbr.rel (%p283) target = $region56
        $region55: #{tpu_custom_call.1} parent=47 // pred_region
          %286 = dma.done [#allocation6], 1024
        $region56: #{tpu_custom_call.1} parent=47 // pred_fallthru
          _
        // Predicated region
        $region57: #{tpu_custom_call.1} parent=47 // pred_check
          %p287 = pneg %p149
        $region58: #{tpu_custom_call.1} parent=47 // pred_check_branch
          %289 = sbr.rel (%p287) target = $region60
        $region59: #{tpu_custom_call.1} parent=47 // pred_region
          %290 = dma.done [#allocation6], 1024
        $region60: #{tpu_custom_call.1} parent=47 // pred_fallthru
          _
        %s291 = smul.u32 2, %s23
        %p292 = scmp.lt.s32.totalorder %s291, 3
        %s293 = scalar_select %p292, %s291, 3
        %s294 = smul.addr %s293, 8
        %s295 = scalar_lea.vmem %s0, %s294
        %p296 = pneg %p44
        %p297 = pneg %p41
        %p298 = pneg %p65
        %p299 = pneg %p62
        %p300 = pneg %p86
        %p301 = pneg %p83
        %p302 = pneg %p107
        %p303 = pneg %p104
        %p304 = pneg %p128
        %p305 = pneg %p125
        %p306 = pneg %p149
        %p307 = pneg %p146
        %p308 = pneg %p170
        %p309 = pneg %p167
        %p310 = pneg %p196
        %p311 = pneg %p193
        %s312 = sand.u32 %s183, 1
        %s313 = scalar_lea.sflag [#allocation4], %s312
        %s314 = sand.u32 %s183, 1
        %s315 = smul.addr %s314, 16
        %s316 = scalar_lea.vmem [#allocation8], %s315
        %s317 = smul.u32 2, %s23
        %p318 = scmp.lt.s32.totalorder %s317, 3
        %s319 = scalar_select %p318, %s317, 3
        %s320 = smul.addr %s319, 8
        %s321 = scalar_lea.vmem %s0, %s320
        %s322 = smul.u32 2, %s23
        %s323 = smul.u32 2, %s23
        %v325 = vld [vmem:[%s321] sm:$0xff]
        %v326 = vld [vmem:[%s321 + $0x8] sm:$0xff]
        %v327 = vlaneseq
        %v328 = vand.u32 %v327, 127
        %v329 = vadd.s32 %v328, 128
        %v330 = vadd.s32 %v328, 256
        %v331 = vadd.s32 %v328, 384
        %v332 = vadd.s32 %v328, 512
        %333 = vset.pattern.permute.xlu0 0
        %334 = vperm.xlu0 %333, %v325
        %v335 = vpop.permute.xlu0 %334
        %336 = vset.pattern.permute.xlu0 0
        %337 = vperm.xlu0 %336, %v326
        %v338 = vpop.permute.xlu0 %337
        %vm339 = vcmp.eq.s32.totalorder %v328, %v335
        %vm340 = vcmp.eq.s32.totalorder %v329, %v335
        %vm341 = vcmp.eq.s32.totalorder %v330, %v335
        %vm342 = vcmp.eq.s32.totalorder %v331, %v335
        %vm343 = vcmp.eq.s32.totalorder %v332, %v335
        %vm344 = vcmp.eq.s32.totalorder %v328, %v338
        %vm345 = vcmp.eq.s32.totalorder %v329, %v338
        %vm346 = vcmp.eq.s32.totalorder %v330, %v338
        %vm347 = vcmp.eq.s32.totalorder %v331, %v338
        %vm348 = vcmp.eq.s32.totalorder %v332, %v338
        %v349 = vadd.s32 %v325, 128
        %v350 = vadd.s32 %v326, 128
        %351 = vset.pattern.permute.xlu0 1
        %352 = vperm.xlu0 %351, %v349
        %v353 = vpop.permute.xlu0 %352
        %354 = vset.pattern.permute.xlu0 1
        %355 = vperm.xlu0 %354, %v350
        %v356 = vpop.permute.xlu0 %355
        %vm357 = vcmp.eq.s32.totalorder %v328, %v353
        %vm358 = vcmp.eq.s32.totalorder %v329, %v353
        %vm359 = vcmp.eq.s32.totalorder %v330, %v353
        %vm360 = vcmp.eq.s32.totalorder %v331, %v353
        %vm361 = vcmp.eq.s32.totalorder %v332, %v353
        %vm362 = vcmp.eq.s32.totalorder %v328, %v356
        %vm363 = vcmp.eq.s32.totalorder %v329, %v356
        %vm364 = vcmp.eq.s32.totalorder %v330, %v356
        %vm365 = vcmp.eq.s32.totalorder %v331, %v356
        %vm366 = vcmp.eq.s32.totalorder %v332, %v356
        %vm367 = vmor %vm339, %vm357
        %vm368 = vmor %vm340, %vm358
        %vm369 = vmor %vm341, %vm359
        %vm370 = vmor %vm342, %vm360
        %vm371 = vmor %vm343, %vm361
        %vm372 = vmor %vm344, %vm362
        %vm373 = vmor %vm345, %vm363
        %vm374 = vmor %vm346, %vm364
        %vm375 = vmor %vm347, %vm365
        %vm376 = vmor %vm348, %vm366
        %v377 = vadd.s32 %v325, 256
        %v378 = vadd.s32 %v326, 256
        %379 = vset.pattern.permute.xlu0 2
        %380 = vperm.xlu0 %379, %v377
        %v381 = vpop.permute.xlu0 %380
        %382 = vset.pattern.permute.xlu0 2
        %383 = vperm.xlu0 %382, %v378
        %v384 = vpop.permute.xlu0 %383
        %vm385 = vcmp.eq.s32.totalorder %v328, %v381
        %vm386 = vcmp.eq.s32.totalorder %v329, %v381
        %vm387 = vcmp.eq.s32.totalorder %v330, %v381
        %vm388 = vcmp.eq.s32.totalorder %v331, %v381
        %vm389 = vcmp.eq.s32.totalorder %v332, %v381
        %vm390 = vcmp.eq.s32.totalorder %v328, %v384
        %vm391 = vcmp.eq.s32.totalorder %v329, %v384
        %vm392 = vcmp.eq.s32.totalorder %v330, %v384
        %vm393 = vcmp.eq.s32.totalorder %v331, %v384
        %vm394 = vcmp.eq.s32.totalorder %v332, %v384
        %vm395 = vmor %vm367, %vm385
        %vm396 = vmor %vm368, %vm386
        %vm397 = vmor %vm369, %vm387
        %vm398 = vmor %vm370, %vm388
        %vm399 = vmor %vm371, %vm389
        %vm400 = vmor %vm372, %vm390
        %vm401 = vmor %vm373, %vm391
        %vm402 = vmor %vm374, %vm392
        %vm403 = vmor %vm375, %vm393
        %vm404 = vmor %vm376, %vm394
        %v405 = vadd.s32 %v325, 384
        %v406 = vadd.s32 %v326, 384
        %407 = vset.pattern.permute.xlu0 3
        %408 = vperm.xlu0 %407, %v405
        %v409 = vpop.permute.xlu0 %408
        %410 = vset.pattern.permute.xlu0 3
        %411 = vperm.xlu0 %410, %v406
        %v412 = vpop.permute.xlu0 %411
        %vm413 = vcmp.eq.s32.totalorder %v328, %v409
        %vm414 = vcmp.eq.s32.totalorder %v329, %v409
        %vm415 = vcmp.eq.s32.totalorder %v330, %v409
        %vm416 = vcmp.eq.s32.totalorder %v331, %v409
        %vm417 = vcmp.eq.s32.totalorder %v332, %v409
        %vm418 = vcmp.eq.s32.totalorder %v328, %v412
        %vm419 = vcmp.eq.s32.totalorder %v329, %v412
        %vm420 = vcmp.eq.s32.totalorder %v330, %v412
        %vm421 = vcmp.eq.s32.totalorder %v331, %v412
        %vm422 = vcmp.eq.s32.totalorder %v332, %v412
        %vm423 = vmor %vm395, %vm413
        %vm424 = vmor %vm396, %vm414
        %vm425 = vmor %vm397, %vm415
        %vm426 = vmor %vm398, %vm416
        %vm427 = vmor %vm399, %vm417
        %vm428 = vmor %vm400, %vm418
        %vm429 = vmor %vm401, %vm419
        %vm430 = vmor %vm402, %vm420
        %vm431 = vmor %vm403, %vm421
        %vm432 = vmor %vm404, %vm422
        %v433 = vadd.s32 %v325, 512
        %v434 = vadd.s32 %v326, 512
        %435 = vset.pattern.permute.xlu0 4
        %436 = vperm.xlu0 %435, %v433
        %v437 = vpop.permute.xlu0 %436
        %438 = vset.pattern.permute.xlu0 4
        %439 = vperm.xlu0 %438, %v434
        %v440 = vpop.permute.xlu0 %439
        %vm441 = vcmp.eq.s32.totalorder %v328, %v437
        %vm442 = vcmp.eq.s32.totalorder %v329, %v437
        %vm443 = vcmp.eq.s32.totalorder %v330, %v437
        %vm444 = vcmp.eq.s32.totalorder %v331, %v437
        %vm445 = vcmp.eq.s32.totalorder %v332, %v437
        %vm446 = vcmp.eq.s32.totalorder %v328, %v440
        %vm447 = vcmp.eq.s32.totalorder %v329, %v440
        %vm448 = vcmp.eq.s32.totalorder %v330, %v440
        %vm449 = vcmp.eq.s32.totalorder %v331, %v440
        %vm450 = vcmp.eq.s32.totalorder %v332, %v440
        %vm451 = vmor %vm423, %vm441
        %vm452 = vmor %vm424, %vm442
        %vm453 = vmor %vm425, %vm443
        %vm454 = vmor %vm426, %vm444
        %vm455 = vmor %vm427, %vm445
        %vm456 = vmor %vm428, %vm446
        %vm457 = vmor %vm429, %vm447
        %vm458 = vmor %vm430, %vm448
        %vm459 = vmor %vm431, %vm449
        %vm460 = vmor %vm432, %vm450
        %v461 = vsel %vm451, 1, 0
        %v462 = vsel %vm452, 1, 0
        %v463 = vsel %vm453, 1, 0
        %v464 = vsel %vm454, 1, 0
        %v465 = vsel %vm455, 1, 0
        %v466 = vsel %vm456, 1, 0
        %v467 = vsel %vm457, 1, 0
        %v468 = vsel %vm458, 1, 0
        %v469 = vsel %vm459, 1, 0
        %v470 = vsel %vm460, 1, 0
        %v471 = vcvt.s32.f32 %v461
        %v472 = vcvt.s32.f32 %v462
        %v473 = vcvt.s32.f32 %v463
        %v474 = vcvt.s32.f32 %v464
        %v475 = vcvt.s32.f32 %v465
        %v476 = vcvt.s32.f32 %v466
        %v477 = vcvt.s32.f32 %v467
        %v478 = vcvt.s32.f32 %v468
        %v479 = vcvt.s32.f32 %v469
        %v480 = vcvt.s32.f32 %v470
        %v481 = vpack.c.bf16 %v476, %v471
        %v482 = vpack.c.bf16 %v477, %v472
        %v483 = vpack.c.bf16 %v478, %v473
        %v484 = vpack.c.bf16 %v479, %v474
        %v485 = vpack.c.bf16 %v480, %v475
        %v486 = vld [vmem:[#allocation2] sm:$0xf]
        %v487 = vld [vmem:[#allocation2 + $0x4] sm:$0xf]
        %v488 = vld [vmem:[#allocation2 + $0x8] sm:$0xf]
        %v489 = vld [vmem:[#allocation2 + $0xc] sm:$0xf]
        %v490 = vld [vmem:[#allocation2 + $0x10] sm:$0xf]
        %v491 = vld [vmem:[#allocation2 + $0x14] sm:$0xf]
        %v492 = vld [vmem:[#allocation2 + $0x18] sm:$0xf]
        %v493 = vld [vmem:[#allocation2 + $0x1c] sm:$0xf]
        %v494 = vld [vmem:[#allocation2 + $0x20] sm:$0xf]
        %v495 = vld [vmem:[#allocation2 + $0x24] sm:$0xf]
        %v496 = vld [vmem:[#allocation2 + $0x28] sm:$0xf]
        %v497 = vld [vmem:[#allocation2 + $0x2c] sm:$0xf]
        %v498 = vld [vmem:[#allocation2 + $0x30] sm:$0xf]
        %v499 = vld [vmem:[#allocation2 + $0x34] sm:$0xf]
        %v500 = vld [vmem:[#allocation2 + $0x38] sm:$0xf]
        %v501 = vld [vmem:[#allocation2 + $0x3c] sm:$0xf]
        %v502 = vld [vmem:[#allocation2 + $0x40] sm:$0xf]
        %v503 = vld [vmem:[#allocation2 + $0x44] sm:$0xf]
        %v504 = vld [vmem:[#allocation2 + $0x48] sm:$0xf]
        %v505 = vld [vmem:[#allocation2 + $0x4c] sm:$0xf]
        %v506 = vld [vmem:[#allocation2 + $0x50] sm:$0xf]
        %v507 = vld [vmem:[#allocation2 + $0x54] sm:$0xf]
        %v508 = vld [vmem:[#allocation2 + $0x58] sm:$0xf]
        %v509 = vld [vmem:[#allocation2 + $0x5c] sm:$0xf]
        %v510 = vld [vmem:[#allocation2 + $0x60] sm:$0xf]
        %v511 = vld [vmem:[#allocation2 + $0x64] sm:$0xf]
        %v512 = vld [vmem:[#allocation2 + $0x68] sm:$0xf]
        %v513 = vld [vmem:[#allocation2 + $0x6c] sm:$0xf]
        %v514 = vld [vmem:[#allocation2 + $0x70] sm:$0xf]
        %v515 = vld [vmem:[#allocation2 + $0x74] sm:$0xf]
        %v516 = vld [vmem:[#allocation2 + $0x78] sm:$0xf]
        %v517 = vld [vmem:[#allocation2 + $0x7c] sm:$0xf]
        %v518 = vld [vmem:[#allocation2 + $0x80] sm:$0xf]
        %v519 = vld [vmem:[#allocation2 + $0x84] sm:$0xf]
        %v520 = vld [vmem:[#allocation2 + $0x88] sm:$0xf]
        %v521 = vld [vmem:[#allocation2 + $0x8c] sm:$0xf]
        %v522 = vld [vmem:[#allocation2 + $0x90] sm:$0xf]
        %v523 = vld [vmem:[#allocation2 + $0x94] sm:$0xf]
        %v524 = vld [vmem:[#allocation2 + $0x98] sm:$0xf]
        %v525 = vld [vmem:[#allocation2 + $0x9c] sm:$0xf]
        %v526 = vld [vmem:[#allocation2 + $0xa0] sm:$0xf]
        %v527 = vld [vmem:[#allocation2 + $0xa4] sm:$0xf]
        %v528 = vld [vmem:[#allocation2 + $0xa8] sm:$0xf]
        %v529 = vld [vmem:[#allocation2 + $0xac] sm:$0xf]
        %v530 = vld [vmem:[#allocation2 + $0xb0] sm:$0xf]
        %v531 = vld [vmem:[#allocation2 + $0xb4] sm:$0xf]
        %v532 = vld [vmem:[#allocation2 + $0xb8] sm:$0xf]
        %v533 = vld [vmem:[#allocation2 + $0xbc] sm:$0xf]
        %v534 = vld [vmem:[#allocation2 + $0xc0] sm:$0xf]
        %v535 = vld [vmem:[#allocation2 + $0xc4] sm:$0xf]
        %v536 = vld [vmem:[#allocation2 + $0xc8] sm:$0xf]
        %v537 = vld [vmem:[#allocation2 + $0xcc] sm:$0xf]
        %v538 = vld [vmem:[#allocation2 + $0xd0] sm:$0xf]
        %v539 = vld [vmem:[#allocation2 + $0xd4] sm:$0xf]
        %v540 = vld [vmem:[#allocation2 + $0xd8] sm:$0xf]
        %v541 = vld [vmem:[#allocation2 + $0xdc] sm:$0xf]
        %v542 = vld [vmem:[#allocation2 + $0xe0] sm:$0xf]
        %v543 = vld [vmem:[#allocation2 + $0xe4] sm:$0xf]
        %v544 = vld [vmem:[#allocation2 + $0xe8] sm:$0xf]
        %v545 = vld [vmem:[#allocation2 + $0xec] sm:$0xf]
        %v546 = vld [vmem:[#allocation2 + $0xf0] sm:$0xf]
        %v547 = vld [vmem:[#allocation2 + $0xf4] sm:$0xf]
        %v548 = vld [vmem:[#allocation2 + $0xf8] sm:$0xf]
        %v549 = vld [vmem:[#allocation2 + $0xfc] sm:$0xf]
        %v550 = vld [vmem:[#allocation2 + $0x100] sm:$0xf]
        %v551 = vld [vmem:[#allocation2 + $0x104] sm:$0xf]
        %v552 = vld [vmem:[#allocation2 + $0x108] sm:$0xf]
        %v553 = vld [vmem:[#allocation2 + $0x10c] sm:$0xf]
        %v554 = vld [vmem:[#allocation2 + $0x110] sm:$0xf]
        %v555 = vld [vmem:[#allocation2 + $0x114] sm:$0xf]
        %v556 = vld [vmem:[#allocation2 + $0x118] sm:$0xf]
        %v557 = vld [vmem:[#allocation2 + $0x11c] sm:$0xf]
        %v558 = vld [vmem:[#allocation2 + $0x120] sm:$0xf]
        %v559 = vld [vmem:[#allocation2 + $0x124] sm:$0xf]
        %v560 = vld [vmem:[#allocation2 + $0x128] sm:$0xf]
        %v561 = vld [vmem:[#allocation2 + $0x12c] sm:$0xf]
        %v562 = vld [vmem:[#allocation2 + $0x130] sm:$0xf]
        %v563 = vld [vmem:[#allocation2 + $0x134] sm:$0xf]
        %v564 = vld [vmem:[#allocation2 + $0x138] sm:$0xf]
        %v565 = vld [vmem:[#allocation2 + $0x13c] sm:$0xf]
        %v566 = vld [vmem:[%s2] sm:$0x1]
        %v568 = vlaneseq
        %v569 = vshrl.u32 %v568, 7
        %v570 = vsub.s32 0, %v569
        %v571 = vrot.slane %v566, %v570
        %v653 = vunpack.c.l.b16 %v486
        %v654 = vunpack.c.l.b16 %v487
        %v655 = vunpack.c.l.b16 %v488
        %v656 = vunpack.c.l.b16 %v489
        %v657 = vunpack.c.l.b16 %v490
        %v658 = vunpack.c.l.b16 %v491
        %v659 = vunpack.c.l.b16 %v492
        %v660 = vunpack.c.l.b16 %v493
        %v661 = vunpack.c.l.b16 %v494
        %v662 = vunpack.c.l.b16 %v495
        %v663 = vunpack.c.l.b16 %v496
        %v664 = vunpack.c.l.b16 %v497
        %v665 = vunpack.c.l.b16 %v498
        %v666 = vunpack.c.l.b16 %v499
        %v667 = vunpack.c.l.b16 %v500
        %v668 = vunpack.c.l.b16 %v501
        %v669 = vunpack.c.l.b16 %v502
        %v670 = vunpack.c.l.b16 %v503
        %v671 = vunpack.c.l.b16 %v504
        %v672 = vunpack.c.l.b16 %v505
        %v673 = vunpack.c.l.b16 %v506
        %v674 = vunpack.c.l.b16 %v507
        %v675 = vunpack.c.l.b16 %v508
        %v676 = vunpack.c.l.b16 %v509
        %v677 = vunpack.c.l.b16 %v510
        %v678 = vunpack.c.l.b16 %v511
        %v679 = vunpack.c.l.b16 %v512
        %v680 = vunpack.c.l.b16 %v513
        %v681 = vunpack.c.l.b16 %v514
        %v682 = vunpack.c.l.b16 %v515
        %v683 = vunpack.c.l.b16 %v516
        %v684 = vunpack.c.l.b16 %v517
        %v685 = vunpack.c.l.b16 %v518
        %v686 = vunpack.c.l.b16 %v519
        %v687 = vunpack.c.l.b16 %v520
        %v688 = vunpack.c.l.b16 %v521
        %v689 = vunpack.c.l.b16 %v522
        %v690 = vunpack.c.l.b16 %v523
        %v691 = vunpack.c.l.b16 %v524
        %v692 = vunpack.c.l.b16 %v525
        %v693 = vunpack.c.l.b16 %v526
        %v694 = vunpack.c.l.b16 %v527
        %v695 = vunpack.c.l.b16 %v528
        %v696 = vunpack.c.l.b16 %v529
        %v697 = vunpack.c.l.b16 %v530
        %v698 = vunpack.c.l.b16 %v531
        %v699 = vunpack.c.l.b16 %v532
        %v700 = vunpack.c.l.b16 %v533
        %v701 = vunpack.c.l.b16 %v534
        %v702 = vunpack.c.l.b16 %v535
        %v703 = vunpack.c.l.b16 %v536
        %v704 = vunpack.c.l.b16 %v537
        %v705 = vunpack.c.l.b16 %v538
        %v706 = vunpack.c.l.b16 %v539
        %v707 = vunpack.c.l.b16 %v540
        %v708 = vunpack.c.l.b16 %v541
        %v709 = vunpack.c.l.b16 %v542
        %v710 = vunpack.c.l.b16 %v543
        %v711 = vunpack.c.l.b16 %v544
        %v712 = vunpack.c.l.b16 %v545
        %v713 = vunpack.c.l.b16 %v546
        %v714 = vunpack.c.l.b16 %v547
        %v715 = vunpack.c.l.b16 %v548
        %v716 = vunpack.c.l.b16 %v549
        %v717 = vunpack.c.l.b16 %v550
        %v718 = vunpack.c.l.b16 %v551
        %v719 = vunpack.c.l.b16 %v552
        %v720 = vunpack.c.l.b16 %v553
        %v721 = vunpack.c.l.b16 %v554
        %v722 = vunpack.c.l.b16 %v555
        %v723 = vunpack.c.l.b16 %v556
        %v724 = vunpack.c.l.b16 %v557
        %v725 = vunpack.c.l.b16 %v558
        %v726 = vunpack.c.l.b16 %v559
        %v727 = vunpack.c.l.b16 %v560
        %v728 = vunpack.c.l.b16 %v561
        %v729 = vunpack.c.l.b16 %v562
        %v730 = vunpack.c.l.b16 %v563
        %v731 = vunpack.c.l.b16 %v564
        %v732 = vunpack.c.l.b16 %v565
        %v733 = vpack.c.b16 %v654, %v653
        %v734 = vpack.c.b16 %v656, %v655
        %v735 = vpack.c.b16 %v658, %v657
        %v736 = vpack.c.b16 %v660, %v659
        %v737 = vpack.c.b16 %v662, %v661
        %v738 = vpack.c.b16 %v664, %v663
        %v739 = vpack.c.b16 %v666, %v665
        %v740 = vpack.c.b16 %v668, %v667
        %v741 = vpack.c.b16 %v670, %v669
        %v742 = vpack.c.b16 %v672, %v671
        %v743 = vpack.c.b16 %v674, %v673
        %v744 = vpack.c.b16 %v676, %v675
        %v745 = vpack.c.b16 %v678, %v677
        %v746 = vpack.c.b16 %v680, %v679
        %v747 = vpack.c.b16 %v682, %v681
        %v748 = vpack.c.b16 %v684, %v683
        %v749 = vpack.c.b16 %v686, %v685
        %v750 = vpack.c.b16 %v688, %v687
        %v751 = vpack.c.b16 %v690, %v689
        %v752 = vpack.c.b16 %v692, %v691
        %v753 = vpack.c.b16 %v694, %v693
        %v754 = vpack.c.b16 %v696, %v695
        %v755 = vpack.c.b16 %v698, %v697
        %v756 = vpack.c.b16 %v700, %v699
        %v757 = vpack.c.b16 %v702, %v701
        %v758 = vpack.c.b16 %v704, %v703
        %v759 = vpack.c.b16 %v706, %v705
        %v760 = vpack.c.b16 %v708, %v707
        %v761 = vpack.c.b16 %v710, %v709
        %v762 = vpack.c.b16 %v712, %v711
        %v763 = vpack.c.b16 %v714, %v713
        %v764 = vpack.c.b16 %v716, %v715
        %v765 = vpack.c.b16 %v718, %v717
        %v766 = vpack.c.b16 %v720, %v719
        %v767 = vpack.c.b16 %v722, %v721
        %v768 = vpack.c.b16 %v724, %v723
        %v769 = vpack.c.b16 %v726, %v725
        %v770 = vpack.c.b16 %v728, %v727
        %v771 = vpack.c.b16 %v730, %v729
        %v772 = vpack.c.b16 %v732, %v731
        %813 = vmatprep.subr.bf16.mxu0 0
        %814 = vmatpush1.bf16.msra.mxu0 %v733
        %815 = vmatprep.subr.bf16.mxu0 0
        %816 = vmatpush1.bf16.msra.mxu0 %v734
        %817 = vmatprep.subr.bf16.mxu0 0
        %818 = vmatpush1.bf16.msra.mxu0 %v735
        %819 = vmatprep.subr.bf16.mxu0 0
        %820 = vmatpush1.bf16.msra.mxu0 %v736
        %821 = vmatprep.subr.bf16.mxu0 0
        %822 = vmatpush1.bf16.msra.mxu0 %v737
        %823 = vmatprep.subr.bf16.mxu0 0
        %824 = vmatpush1.bf16.msra.mxu0 %v738
        %825 = vmatprep.subr.bf16.mxu0 0
        %826 = vmatpush1.bf16.msra.mxu0 %v739
        %827 = vmatprep.subr.bf16.mxu0 0
        %828 = vmatpush1.bf16.msra.mxu0 %v740
        %829 = vmatprep.subr.bf16.mxu0 0
        %830 = vmatpush1.bf16.msra.mxu0 %v741
        %831 = vmatprep.subr.bf16.mxu0 0
        %832 = vmatpush1.bf16.msra.mxu0 %v742
        %833 = vmatprep.subr.bf16.mxu0 0
        %834 = vmatpush1.bf16.msra.mxu0 %v743
        %835 = vmatprep.subr.bf16.mxu0 0
        %836 = vmatpush1.bf16.msra.mxu0 %v744
        %837 = vmatprep.subr.bf16.mxu0 0
        %838 = vmatpush1.bf16.msra.mxu0 %v745
        %839 = vmatprep.subr.bf16.mxu0 0
        %840 = vmatpush1.bf16.msra.mxu0 %v746
        %841 = vmatprep.subr.bf16.mxu0 0
        %842 = vmatpush1.bf16.msra.mxu0 %v747
        %843 = vmatprep.subr.bf16.mxu0 0
        %844 = vmatpush1.bf16.msra.mxu0 %v748
        %845 = vmatprep.mubr.bf16.mxu0 %v482
        %846 = vmatmul.mubr.bf16.gmra.mrb[0].mxu0 %v481
        %v847 = vpop.f32.mrb[0].mxu0
        %v848 = vadd.f32 %v571, %v847
        %v849 = vpop.f32.mrb[0].mxu0
        %v850 = vpop.f32.mrb[0].mxu0
        %v851 = vadd.f32 %v571, %v850
        %v852 = vpop.f32.mrb[0].mxu0
        %853 = vdwg.mxu0
        %854 = vmatprep.subr.bf16.mxu0 0
        %855 = vmatpush1.bf16.msra.mxu0 %v749
        %856 = vmatprep.subr.bf16.mxu0 0
        %857 = vmatpush1.bf16.msra.mxu0 %v750
        %858 = vmatprep.subr.bf16.mxu0 0
        %859 = vmatpush1.bf16.msra.mxu0 %v751
        %860 = vmatprep.subr.bf16.mxu0 0
        %861 = vmatpush1.bf16.msra.mxu0 %v752
        %862 = vmatprep.subr.bf16.mxu0 0
        %863 = vmatpush1.bf16.msra.mxu0 %v753
        %864 = vmatprep.subr.bf16.mxu0 0
        %865 = vmatpush1.bf16.msra.mxu0 %v754
        %866 = vmatprep.subr.bf16.mxu0 0
        %867 = vmatpush1.bf16.msra.mxu0 %v755
        %868 = vmatprep.subr.bf16.mxu0 0
        %869 = vmatpush1.bf16.msra.mxu0 %v756
        %870 = vmatprep.subr.bf16.mxu0 0
        %871 = vmatpush1.bf16.msra.mxu0 %v757
        %872 = vmatprep.subr.bf16.mxu0 0
        %873 = vmatpush1.bf16.msra.mxu0 %v758
        %874 = vmatprep.subr.bf16.mxu0 0
        %875 = vmatpush1.bf16.msra.mxu0 %v759
        %876 = vmatprep.subr.bf16.mxu0 0
        %877 = vmatpush1.bf16.msra.mxu0 %v760
        %878 = vmatprep.subr.bf16.mxu0 0
        %879 = vmatpush1.bf16.msra.mxu0 %v761
        %880 = vmatprep.subr.bf16.mxu0 0
        %881 = vmatpush1.bf16.msra.mxu0 %v762
        %882 = vmatprep.subr.bf16.mxu0 0
        %883 = vmatpush1.bf16.msra.mxu0 %v763
        %884 = vmatprep.subr.bf16.mxu0 0
        %885 = vmatpush1.bf16.msra.mxu0 %v764
        %886 = vmatprep.mubr.bf16.mxu0 %v484
        %887 = vmatmul.mubr.bf16.gmra.mrb[0].mxu0 %v483
        %v888 = vpop.f32.mrb[0].mxu0
        %v889 = vadd.f32 %v848, %v888
        %v890 = vpop.f32.mrb[0].mxu0
        %v891 = vpop.f32.mrb[0].mxu0
        %v892 = vadd.f32 %v851, %v891
        %v893 = vpop.f32.mrb[0].mxu0
        %894 = vdwg.mxu0
        %895 = vmatprep.subr.bf16.mxu0 0
        %896 = vmatpush1.bf16.msra.mxu0 %v765
        %897 = vmatprep.subr.bf16.mxu0 0
        %898 = vmatpush1.bf16.msra.mxu0 %v766
        %899 = vmatprep.subr.bf16.mxu0 0
        %900 = vmatpush1.bf16.msra.mxu0 %v767
        %901 = vmatprep.subr.bf16.mxu0 0
        %902 = vmatpush1.bf16.msra.mxu0 %v768
        %903 = vmatprep.subr.bf16.mxu0 0
        %904 = vmatpush1.bf16.msra.mxu0 %v769
        %905 = vmatprep.subr.bf16.mxu0 0
        %906 = vmatpush1.bf16.msra.mxu0 %v770
        %907 = vmatprep.subr.bf16.mxu0 0
        %908 = vmatpush1.bf16.msra.mxu0 %v771
        %909 = vmatprep.subr.bf16.mxu0 0
        %910 = vmatpush1.bf16.msra.mxu0 %v772
        %911 = vmatprep.subr.bf16.mxu0 0
        %912 = vmatpush1.bf16.msra.mxu0 0
        %913 = vmatprep.subr.bf16.mxu0 0
        %914 = vmatpush1.bf16.msra.mxu0 0
        %915 = vmatprep.subr.bf16.mxu0 0
        %916 = vmatpush1.bf16.msra.mxu0 0
        %917 = vmatprep.subr.bf16.mxu0 0
        %918 = vmatpush1.bf16.msra.mxu0 0
        %919 = vmatprep.subr.bf16.mxu0 0
        %920 = vmatpush1.bf16.msra.mxu0 0
        %921 = vmatprep.subr.bf16.mxu0 0
        %922 = vmatpush1.bf16.msra.mxu0 0
        %923 = vmatprep.subr.bf16.mxu0 0
        %924 = vmatpush1.bf16.msra.mxu0 0
        %925 = vmatprep.subr.bf16.mxu0 0
        %926 = vmatpush1.bf16.msra.mxu0 0
        %927 = vmatprep.mubr.bf16.mxu0 0
        %928 = vmatmul.mubr.bf16.gmra.mrb[0].mxu0 %v485
        %v929 = vpop.f32.mrb[0].mxu0
        %v930 = vadd.f32 %v889, %v929
        %v931 = vpop.f32.mrb[0].mxu0
        %v932 = vpop.f32.mrb[0].mxu0
        %v933 = vadd.f32 %v892, %v932
        %v934 = vpop.f32.mrb[0].mxu0
        %935 = vdwg.mxu0
        %v936 = vmax.f32 %v930, 0.0
        %v937 = vmax.f32 %v933, 0.0
        %v938 = vpack.c.bf16 %v937, %v936
        %v939 = vld [vmem:[#allocation5] sm:$0xf]
        %v940 = vld [vmem:[#allocation5 + $0x4] sm:$0xf]
        %v941 = vld [vmem:[#allocation5 + $0x8] sm:$0xf]
        %v942 = vld [vmem:[#allocation5 + $0xc] sm:$0xf]
        %v943 = vld [vmem:[#allocation5 + $0x10] sm:$0xf]
        %v944 = vld [vmem:[#allocation5 + $0x14] sm:$0xf]
        %v945 = vld [vmem:[#allocation5 + $0x18] sm:$0xf]
        %v946 = vld [vmem:[#allocation5 + $0x1c] sm:$0xf]
        %v947 = vld [vmem:[#allocation5 + $0x20] sm:$0xf]
        %v948 = vld [vmem:[#allocation5 + $0x24] sm:$0xf]
        %v949 = vld [vmem:[#allocation5 + $0x28] sm:$0xf]
        %v950 = vld [vmem:[#allocation5 + $0x2c] sm:$0xf]
        %v951 = vld [vmem:[#allocation5 + $0x30] sm:$0xf]
        %v952 = vld [vmem:[#allocation5 + $0x34] sm:$0xf]
        %v953 = vld [vmem:[#allocation5 + $0x38] sm:$0xf]
        %v954 = vld [vmem:[#allocation5 + $0x3c] sm:$0xf]
        %v955 = vld [vmem:[%s4] sm:$0x1]
        %v957 = vlaneseq
        %v958 = vshrl.u32 %v957, 7
        %v959 = vsub.s32 0, %v958
        %v960 = vrot.slane %v955, %v959
        %v978 = vunpack.c.l.b16 %v939
        %v979 = vunpack.c.l.b16 %v940
        %v980 = vunpack.c.l.b16 %v941
        %v981 = vunpack.c.l.b16 %v942
        %v982 = vunpack.c.l.b16 %v943
        %v983 = vunpack.c.l.b16 %v944
        %v984 = vunpack.c.l.b16 %v945
        %v985 = vunpack.c.l.b16 %v946
        %v986 = vunpack.c.l.b16 %v947
        %v987 = vunpack.c.l.b16 %v948
        %v988 = vunpack.c.l.b16 %v949
        %v989 = vunpack.c.l.b16 %v950
        %v990 = vunpack.c.l.b16 %v951
        %v991 = vunpack.c.l.b16 %v952
        %v992 = vunpack.c.l.b16 %v953
        %v993 = vunpack.c.l.b16 %v954
        %v994 = vpack.c.b16 %v979, %v978
        %v995 = vpack.c.b16 %v981, %v980
        %v996 = vpack.c.b16 %v983, %v982
        %v997 = vpack.c.b16 %v985, %v984
        %v998 = vpack.c.b16 %v987, %v986
        %v999 = vpack.c.b16 %v989, %v988
        %v1000 = vpack.c.b16 %v991, %v990
        %v1001 = vpack.c.b16 %v993, %v992
        %1010 = vmatprep.subr.bf16.mxu0 0
        %1011 = vmatpush1.bf16.msra.mxu0 %v994
        %1012 = vmatprep.subr.bf16.mxu0 0
        %1013 = vmatpush1.bf16.msra.mxu0 %v995
        %1014 = vmatprep.subr.bf16.mxu0 0
        %1015 = vmatpush1.bf16.msra.mxu0 %v996
        %1016 = vmatprep.subr.bf16.mxu0 0
        %1017 = vmatpush1.bf16.msra.mxu0 %v997
        %1018 = vmatprep.subr.bf16.mxu0 0
        %1019 = vmatpush1.bf16.msra.mxu0 %v998
        %1020 = vmatprep.subr.bf16.mxu0 0
        %1021 = vmatpush1.bf16.msra.mxu0 %v999
        %1022 = vmatprep.subr.bf16.mxu0 0
        %1023 = vmatpush1.bf16.msra.mxu0 %v1000
        %1024 = vmatprep.subr.bf16.mxu0 0
        %1025 = vmatpush1.bf16.msra.mxu0 %v1001
        %1026 = vmatprep.subr.bf16.mxu0 0
        %1027 = vmatpush1.bf16.msra.mxu0 0
        %1028 = vmatprep.subr.bf16.mxu0 0
        %1029 = vmatpush1.bf16.msra.mxu0 0
        %1030 = vmatprep.subr.bf16.mxu0 0
        %1031 = vmatpush1.bf16.msra.mxu0 0
        %1032 = vmatprep.subr.bf16.mxu0 0
        %1033 = vmatpush1.bf16.msra.mxu0 0
        %1034 = vmatprep.subr.bf16.mxu0 0
        %1035 = vmatpush1.bf16.msra.mxu0 0
        %1036 = vmatprep.subr.bf16.mxu0 0
        %1037 = vmatpush1.bf16.msra.mxu0 0
        %1038 = vmatprep.subr.bf16.mxu0 0
        %1039 = vmatpush1.bf16.msra.mxu0 0
        %1040 = vmatprep.subr.bf16.mxu0 0
        %1041 = vmatpush1.bf16.msra.mxu0 0
        %1042 = vmatprep.mubr.bf16.mxu0 0
        %1043 = vmatmul.mubr.bf16.gmra.mrb[0].mxu0 %v938
        %v1044 = vpop.f32.mrb[0].mxu0
        %v1045 = vadd.f32 %v960, %v1044
        %v1046 = vpop.f32.mrb[0].mxu0
        %v1047 = vpop.f32.mrb[0].mxu0
        %v1048 = vadd.f32 %v960, %v1047
        %v1049 = vpop.f32.mrb[0].mxu0
        %1050 = vdwg.mxu0
        %v1051 = vmax.f32 %v1045, 0.0
        %v1052 = vmax.f32 %v1048, 0.0
        %v1053 = vpack.c.bf16 %v1052, %v1051
        %v1054 = vld [vmem:[#allocation7] sm:$0xf]
        %v1055 = vld [vmem:[#allocation7 + $0x4] sm:$0xf]
        %v1056 = vld [vmem:[#allocation7 + $0x8] sm:$0xf]
        %v1057 = vld [vmem:[#allocation7 + $0xc] sm:$0xf]
        %v1058 = vld [vmem:[#allocation7 + $0x10] sm:$0xf]
        %v1059 = vld [vmem:[#allocation7 + $0x14] sm:$0xf]
        %v1060 = vld [vmem:[#allocation7 + $0x18] sm:$0xf]
        %v1061 = vld [vmem:[#allocation7 + $0x1c] sm:$0xf]
        %v1062 = vld [vmem:[#allocation7 + $0x20] sm:$0xf]
        %v1063 = vld [vmem:[#allocation7 + $0x24] sm:$0xf]
        %v1064 = vld [vmem:[#allocation7 + $0x28] sm:$0xf]
        %v1065 = vld [vmem:[#allocation7 + $0x2c] sm:$0xf]
        %v1066 = vld [vmem:[#allocation7 + $0x30] sm:$0xf]
        %v1067 = vld [vmem:[#allocation7 + $0x34] sm:$0xf]
        %v1068 = vld [vmem:[#allocation7 + $0x38] sm:$0xf]
        %v1069 = vld [vmem:[#allocation7 + $0x3c] sm:$0xf]
        %v1070 = vld [vmem:[%s6] sm:$0x1]
        %v1072 = vlaneseq
        %v1073 = vshrl.u32 %v1072, 7
        %v1074 = vsub.s32 0, %v1073
        %v1075 = vrot.slane %v1070, %v1074
        %v1093 = vunpack.c.l.b16 %v1054
        %v1094 = vunpack.c.l.b16 %v1055
        %v1095 = vunpack.c.l.b16 %v1056
        %v1096 = vunpack.c.l.b16 %v1057
        %v1097 = vunpack.c.l.b16 %v1058
        %v1098 = vunpack.c.l.b16 %v1059
        %v1099 = vunpack.c.l.b16 %v1060
        %v1100 = vunpack.c.l.b16 %v1061
        %v1101 = vunpack.c.l.b16 %v1062
        %v1102 = vunpack.c.l.b16 %v1063
        %v1103 = vunpack.c.l.b16 %v1064
        %v1104 = vunpack.c.l.b16 %v1065
        %v1105 = vunpack.c.l.b16 %v1066
        %v1106 = vunpack.c.l.b16 %v1067
        %v1107 = vunpack.c.l.b16 %v1068
        %v1108 = vunpack.c.l.b16 %v1069
        %v1109 = vpack.c.b16 %v1094, %v1093
        %v1110 = vpack.c.b16 %v1096, %v1095
        %v1111 = vpack.c.b16 %v1098, %v1097
        %v1112 = vpack.c.b16 %v1100, %v1099
        %v1113 = vpack.c.b16 %v1102, %v1101
        %v1114 = vpack.c.b16 %v1104, %v1103
        %v1115 = vpack.c.b16 %v1106, %v1105
        %v1116 = vpack.c.b16 %v1108, %v1107
        %1125 = vmatprep.subr.bf16.mxu0 0
        %1126 = vmatpush1.bf16.msra.mxu0 %v1109
        %1127 = vmatprep.subr.bf16.mxu0 0
        %1128 = vmatpush1.bf16.msra.mxu0 %v1110
        %1129 = vmatprep.subr.bf16.mxu0 0
        %1130 = vmatpush1.bf16.msra.mxu0 %v1111
        %1131 = vmatprep.subr.bf16.mxu0 0
        %1132 = vmatpush1.bf16.msra.mxu0 %v1112
        %1133 = vmatprep.subr.bf16.mxu0 0
        %1134 = vmatpush1.bf16.msra.mxu0 %v1113
        %1135 = vmatprep.subr.bf16.mxu0 0
        %1136 = vmatpush1.bf16.msra.mxu0 %v1114
        %1137 = vmatprep.subr.bf16.mxu0 0
        %1138 = vmatpush1.bf16.msra.mxu0 %v1115
        %1139 = vmatprep.subr.bf16.mxu0 0
        %1140 = vmatpush1.bf16.msra.mxu0 %v1116
        %1141 = vmatprep.subr.bf16.mxu0 0
        %1142 = vmatpush1.bf16.msra.mxu0 0
        %1143 = vmatprep.subr.bf16.mxu0 0
        %1144 = vmatpush1.bf16.msra.mxu0 0
        %1145 = vmatprep.subr.bf16.mxu0 0
        %1146 = vmatpush1.bf16.msra.mxu0 0
        %1147 = vmatprep.subr.bf16.mxu0 0
        %1148 = vmatpush1.bf16.msra.mxu0 0
        %1149 = vmatprep.subr.bf16.mxu0 0
        %1150 = vmatpush1.bf16.msra.mxu0 0
        %1151 = vmatprep.subr.bf16.mxu0 0
        %1152 = vmatpush1.bf16.msra.mxu0 0
        %1153 = vmatprep.subr.bf16.mxu0 0
        %1154 = vmatpush1.bf16.msra.mxu0 0
        %1155 = vmatprep.subr.bf16.mxu0 0
        %1156 = vmatpush1.bf16.msra.mxu0 0
        %1157 = vmatprep.mubr.bf16.mxu0 0
        %1158 = vmatmul.mubr.bf16.gmra.mrb[0].mxu0 %v1053
        %v1159 = vpop.f32.mrb[0].mxu0
        %v1160 = vadd.f32 %v1075, %v1159
        %v1161 = vpop.f32.mrb[0].mxu0
        %v1162 = vpop.f32.mrb[0].mxu0
        %v1163 = vadd.f32 %v1075, %v1162
        %v1164 = vpop.f32.mrb[0].mxu0
        %1165 = vdwg.mxu0
        %1166 = vmax.xlane.f32.xlu0 %v1160
        %v1167 = vpop.xlane.xlu0 %1166
        %1168 = vmax.xlane.f32.xlu0 %v1163
        %v1169 = vpop.xlane.xlu0 %1168
        %v1170 = vsub.f32 %v1160, %v1167
        %v1171 = vsub.f32 %v1163, %v1169
        %v1172 = vmul.f32 %v1170, 1.442695
        %v1173 = vpow.pop %v1172
        %v1174 = vmul.f32 %v1171, 1.442695
        %v1175 = vpow.pop %v1174
        %1176 = vadd.xlane.f32.xlu0 %v1173
        %v1177 = vpop.xlane.xlu0 %1176
        %1178 = vadd.xlane.f32.xlu0 %v1175
        %v1179 = vpop.xlane.xlu0 %1178
        %v1180 = vlog2.pop %v1177
        %v1181 = vmul.f32 %v1180, 0.6931472
        %v1182 = vlog2.pop %v1179
        %v1183 = vmul.f32 %v1182, 0.6931472
        %v1184 = vadd.f32 %v1167, %v1181
        %v1185 = vadd.f32 %v1169, %v1183
        %v1186 = vsub.f32 %v1160, %v1184
        %v1187 = vsub.f32 %v1163, %v1185
        %1188 = vst [vmem:[%s316] sm:$0xff] %v1186
        %1189 = vst [vmem:[%s316 + $0x8] sm:$0xff] %v1187
        %s1190 = sand.u32 %s183, 1
        %s1191 = scalar_lea.sflag [#allocation4], %s1190
        %s1192 = sand.u32 %s183, 1
        %s1193 = smul.addr %s1192, 16
        %s1194 = scalar_lea.vmem [#allocation8], %s1193
        // Predicated region
        $region61: #{tpu_custom_call.1} parent=47 // pred_check
          %p1195 = pneg %p193
        $region62: #{tpu_custom_call.1} parent=47 // pred_check_branch
          %1197 = sbr.rel (%p1195) target = $region64
        $region63: #{tpu_custom_call.1} parent=47 // pred_region
          %s1198 = smul.u32 2, %s23
          %s1200 = ssub.s32 256, 256
          %1201 = vsyncadd %s1191, %s1200
          %s1202 = smul.addr %s1198, 128
          %s1203 = scalar_lea.hbm %s7, %s1202
          %s1204 = sshll.u32 %s1194, 4
          %s1205 = int_to_ptr.vmem [resolvable:$true] %s1204
          %1210 = dma.vmem_to_hbm [thread:$0]  %s1205, 256, %s1203, %s1191, 128, 128, 8
        $region64: #{tpu_custom_call.1} parent=47 // pred_fallthru
          _
      $region48: #{tpu_custom_call.1} parent=5 // pred_fallthru
        _
      %p1211 = scmp.le.s32.totalorder 2, %s18
      // Predicated region
      $region65: #{tpu_custom_call.1} parent=5 // pred_check
        %p1212 = pneg %p1211
      $region66: #{tpu_custom_call.1} parent=5 // pred_check_branch
        %1214 = sbr.rel (%p1212) target = $region68
      $region67: #{tpu_custom_call.1} parent=5 // pred_region
        %s1215 = ssub.s32 %s18, 2
        // Predicated region
        $region69: #{tpu_custom_call.1} parent=67 // pred_check
          %p1216 = pneg %p199
        $region70: #{tpu_custom_call.1} parent=67 // pred_check_branch
          %1218 = sbr.rel (%p1216) target = $region72
        $region71: #{tpu_custom_call.1} parent=67 // pred_region
          %s1219 = sand.u32 %s184, 1
          %s1220 = scalar_lea.sflag [#allocation4], %s1219
          %s1221 = sand.u32 %s184, 1
          %s1222 = smul.addr %s1221, 16
          %s1223 = scalar_lea.vmem [#allocation8], %s1222
          %1224 = dma.done %s1220, 256
        $region72: #{tpu_custom_call.1} parent=67 // pred_fallthru
          _
      $region68: #{tpu_custom_call.1} parent=5 // pred_fallthru
        _
    $region6: #{tpu_custom_call.1} parent=1 // loop_footer
      %s22 = sadd.s32 1, %s18
    $region7: #{tpu_custom_call.1} parent=1 // loop_footer_branch
      %17 = sbr.rel target = $region3
    $region8: #{tpu_custom_call.1} parent=1 // loop_exit
      _
    %1225 = vsyncpa [#allocation3], 1
    %s1226 = scalar_lea.sflag [#allocation3], 1
    %1227 = vsyncpa %s1226, 1
    %1228 = vsyncpa [#allocation6], 1
    %1229 = vsyncpa [#allocation4], 1
    %s1230 = scalar_lea.sflag [#allocation4], 1
    %1231 = vsyncpa %s1230, 1

</llo_original>
